<compile_context>
chip_gen: v5e
topology: v5e:2x2
jax: 0.10.0
libtpu: 0.0.40
codegen_flags: <defaults>
</compile_context>

<pallas_src>
import functools

import jax
import jax.numpy as jnp
from jax.experimental import pallas as pl
from jax.experimental.pallas import tpu as pltpu


# ============================================================================
# Host-side weight packing (run ONCE, outside jit).
# ============================================================================
def _pack_w3(w, w_in, stride=1):
    """(3,3,Cin,Cout) conv weight -> (3, w_in*Cin, w_out*Cout) banded matrices.

    out_row[h] = sum_dh  x_row[h + dh - 1] @ BigW[dh]   ('same' conv; columns
    that would read the zero pad are simply absent from the band, so the
    activation is fed unpadded and K = w_in*Cin exactly).
    """
    cin, cout = w.shape[2], w.shape[3]
    w_out = w_in // stride
    cols = jnp.arange(w_out)
    mats = []
    for dh in range(3):
        m = jnp.zeros((w_in, w_out, cin, cout), jnp.float32)
        for dw in range(3):
            a = stride * cols + dw - 1
            valid = (a >= 0) & (a < w_in)
            a_c = jnp.clip(a, 0, w_in - 1)
            contrib = jnp.where(valid[:, None, None],
                                w[dh, dw].astype(jnp.float32)[None], 0.0)
            m = m.at[a_c, cols].add(contrib)
        mats.append(m.transpose(0, 2, 1, 3).reshape(w_in * cin, w_out * cout))
    return jnp.stack(mats)


def _tile_bias(b, w_out):
    return jnp.tile(b.astype(jnp.float32), w_out).reshape(1, w_out * b.shape[0])


def _ps_perm(w_out, nf):
    """Column permutation folding PixelShuffle(2) (PyTorch NCHW ordering) into
    the packed (nf -> 4*nf) up-conv weights: the GEMM output row (w_out*4nf
    lanes) is afterwards just reinterpreted as two rows of 2*w_out*nf lanes."""
    r1 = jnp.arange(2).reshape(2, 1, 1, 1)
    wv = jnp.arange(w_out).reshape(1, w_out, 1, 1)
    r2 = jnp.arange(2).reshape(1, 1, 2, 1)
    cv = jnp.arange(nf).reshape(1, 1, 1, nf)
    return (wv * 4 * nf + cv * 4 + r1 * 2 + r2).reshape(-1)


def _pack_conv(wb, w_in, stride=1, pad_cin_to=None, pad_cout_to=None, ps_nf=None):
    """Pack one 3x3 conv: banded bf16 weights (3, K, nc) + tiled f32 bias (1, nc)."""
    w, b = wb
    w = w.astype(jnp.float32)
    b = b.astype(jnp.float32)
    if pad_cin_to is not None and w.shape[2] < pad_cin_to:
        w = jnp.pad(w, ((0, 0), (0, 0), (0, pad_cin_to - w.shape[2]), (0, 0)))
    if pad_cout_to is not None and w.shape[3] < pad_cout_to:
        pad = pad_cout_to - w.shape[3]
        w = jnp.pad(w, ((0, 0), (0, 0), (0, 0), (0, pad)))
        b = jnp.pad(b, ((0, pad),))
    packed = _pack_w3(w, w_in, stride)
    bt = _tile_bias(b, w_in // stride)
    if ps_nf is not None:                       # fold PixelShuffle(2)
        src = _ps_perm(w_in // stride, ps_nf)
        packed = packed[:, :, src]
        bt = bt[:, src]
    return packed.astype(jnp.bfloat16), bt


def _pack_1x1(wb, width):
    """1x1 conv -> block-diagonal (width*Cin, width*Cout) bf16 matrix.
    TODO(synk): W-tile / cap at 256x256 for realistic widths."""
    w, b = wb
    g = jnp.kron(jnp.eye(width, dtype=jnp.float32),
                 w.reshape(w.shape[-2], w.shape[-1]).astype(jnp.float32))
    return g.astype(jnp.bfloat16), _tile_bias(b, width)


# ============================================================================
# In-kernel helpers (operate on values, not refs).
# ============================================================================
def _shift_down(v, n_img, rows):
    """out[i] = v[i-1] within each image block of `rows` rows (0 at block row 0)."""
    zero = jnp.zeros((1, v.shape[-1]), v.dtype)
    parts = []
    for n in range(n_img):
        parts.append(zero)
        parts.append(v[n * rows:(n + 1) * rows - 1])
    return jnp.concatenate(parts, axis=0)


def _shift_up(v, n_img, rows):
    """out[i] = v[i+1] within each image block of `rows` rows (0 at block last row)."""
    zero = jnp.zeros((1, v.shape[-1]), v.dtype)
    parts = []
    for n in range(n_img):
        parts.append(v[n * rows + 1:(n + 1) * rows])
        parts.append(zero)
    return jnp.concatenate(parts, axis=0)


def _conv_step(a, w_ref, b_ref, n_img, rows, relu):
    """One 3x3 'same' conv on a row-flat (n_img*rows, W*Cin) activation value:
    three lane-dense bf16 MXU GEMMs against the banded weights; vertical taps
    applied as per-image sublane shifts on the f32 accumulators."""
    lhs = a.astype(jnp.bfloat16)
    r0 = jnp.dot(lhs, w_ref[0], preferred_element_type=jnp.float32)
    r1 = jnp.dot(lhs, w_ref[1], preferred_element_type=jnp.float32)
    r2 = jnp.dot(lhs, w_ref[2], preferred_element_type=jnp.float32)
    acc = (r1 + _shift_down(r0, n_img, rows) + _shift_up(r2, n_img, rows)
           + b_ref[...])
    if relu:
        acc = jnp.maximum(acc, 0.0)
    return acc


def _zero_map(nd, i):
    return (0,) * nd


def _full_specs(arrays):
    return [pl.BlockSpec(a.shape, functools.partial(_zero_map, a.ndim))
            for a in arrays]


# ============================================================================
# Fused pallas_call builders.
# ============================================================================
def conv_chain(x_flat, layers, *, n_img, rows, relu_flags, out_dtype=jnp.bfloat16):
    """L fused stride-1 3x3 convs on a row-flat (n_img*rows, K) activation in
    ONE pallas_call; all packed weights stay VMEM-resident, intermediates never
    touch HBM.  layers: list of (packed_w (3,K,nc) bf16, tiled_bias (1,nc) f32)."""
    assert len(layers) == len(relu_flags)
    M = x_flat.shape[0]
    assert M == n_img * rows
    L = len(layers)
    nc_last = layers[-1][0].shape[-1]

    def kernel(*refs):
        o_ref = refs[-1]
        a = refs[0][...]
        for l in range(L):
            a = _conv_step(a, refs[1 + 2 * l], refs[2 + 2 * l],
                           n_img, rows, relu_flags[l])
        o_ref[...] = a.astype(o_ref.dtype)

    operands = [x_flat]
    for (w, b) in layers:
        operands += [w, b]
    return pl.pallas_call(
        kernel,
        grid=(1,),
        out_shape=jax.ShapeDtypeStruct((M, nc_last), out_dtype),
        in_specs=_full_specs(operands),
        out_specs=pl.BlockSpec((M, nc_last), functools.partial(_zero_map, 2)),
        compiler_params=pltpu.CompilerParams(dimension_semantics=("arbitrary",)),
    )(*operands)


def down_conv(x_flat, w_packed, b_tiled, *, n_img, rows_in, relu=True,
              out_dtype=jnp.bfloat16):
    """Stride-2 3x3 conv (+relu), computed directly: rows parity-split on the
    host, three banded GEMMs, per-image shift for the dh=0 tap."""
    assert rows_in % 2 == 0
    rows_out = rows_in // 2
    x_even = x_flat[0::2]      # row 2h of each image (rows_in even => works globally)
    x_odd = x_flat[1::2]       # row 2h+1 of each image
    M2 = n_img * rows_out
    nc = w_packed.shape[-1]

    def kernel(xe_ref, xo_ref, w_ref, b_ref, o_ref):
        xe = xe_ref[...]
        xo = xo_ref[...]
        re1 = jnp.dot(xe, w_ref[1], preferred_element_type=jnp.float32)
        ro0 = jnp.dot(xo, w_ref[0], preferred_element_type=jnp.float32)
        ro2 = jnp.dot(xo, w_ref[2], preferred_element_type=jnp.float32)
        acc = re1 + ro2 + _shift_down(ro0, n_img, rows_out) + b_ref[...]
        if relu:
            acc = jnp.maximum(acc, 0.0)
        o_ref[...] = acc.astype(o_ref.dtype)

    operands = [x_even, x_odd, w_packed, b_tiled]
    return pl.pallas_call(
        kernel,
        grid=(1,),
        out_shape=jax.ShapeDtypeStruct((M2, nc), out_dtype),
        in_specs=_full_specs(operands),
        out_specs=pl.BlockSpec((M2, nc), functools.partial(_zero_map, 2)),
    )(*operands)


def modblock(z_flat, trunk, alpha, belta, *, n_img, rows, plus_z,
             res_scale=0.2, out_dtype=jnp.bfloat16):
    """Fused   trunk_RDB(z) * alpha(z) + belta(z) [+ z]   in ONE pallas_call.
    trunk = mulRDB stand-in: chained 3x3 convs (relu on all but last) with a
    0.2-scaled residual.  alpha/belta = Sequential(Conv, Conv), no activation."""
    M, K = z_flat.shape
    assert M == n_img * rows
    Lt = len(trunk)

    def kernel(*refs):
        z_ref = refs[0]
        tw = refs[1:1 + 2 * Lt]
        aw = refs[1 + 2 * Lt:5 + 2 * Lt]
        bw = refs[5 + 2 * Lt:9 + 2 * Lt]
        o_ref = refs[9 + 2 * Lt]

        z = z_ref[...]
        zf = z.astype(jnp.float32)
        # trunk (mulRDBx{4,6} stand-in)
        y = z
        for l in range(Lt - 1):
            y = _conv_step(y, tw[2 * l], tw[2 * l + 1], n_img, rows, True)
        t = zf + res_scale * _conv_step(y, tw[2 * Lt - 2], tw[2 * Lt - 1],
                                        n_img, rows, False)
        # alpha / belta
        a = _conv_step(z, aw[0], aw[1], n_img, rows, False)
        a = _conv_step(a, aw[2], aw[3], n_img, rows, False)
        bta = _conv_step(z, bw[0], bw[1], n_img, rows, False)
        bta = _conv_step(bta, bw[2], bw[3], n_img, rows, False)
        out = t * a + bta
        if plus_z:
            out = out + zf
        o_ref[...] = out.astype(o_ref.dtype)

    operands = [z_flat]
    for (w, b) in list(trunk) + list(alpha) + list(belta):
        operands += [w, b]
    return pl.pallas_call(
        kernel,
        grid=(1,),
        out_shape=jax.ShapeDtypeStruct((M, K), out_dtype),
        in_specs=_full_specs(operands),
        out_specs=pl.BlockSpec((M, K), functools.partial(_zero_map, 2)),
    )(*operands)


def dm_modulate(fea_flat, prev_flat, g0, c0, g1, c1, out_dtype=jnp.bfloat16):
    """DM_F_1X1 stand-in, fused with the residual add:
       out = prev + conv1x1(prev * sigmoid(conv1x1(fea)))."""
    M, nc = prev_flat.shape

    def kernel(fea_ref, prev_ref, g0_ref, c0_ref, g1_ref, c1_ref, o_ref):
        fea = fea_ref[...]
        z = jnp.dot(fea, g0_ref[...], preferred_element_type=jnp.float32) + c0_ref[...]
        gate = pl.reciprocal(1.0 + jnp.exp(-z), approx=True)      # EUP sigmoid
        prev = prev_ref[...].astype(jnp.float32)
        gated = (prev * gate).astype(jnp.bfloat16)
        res = jnp.dot(gated, g1_ref[...], preferred_element_type=jnp.float32) + c1_ref[...]
        o_ref[...] = (prev + res).astype(o_ref.dtype)

    operands = [fea_flat, prev_flat, g0, c0, g1, c1]
    return pl.pallas_call(
        kernel,
        grid=(1,),
        out_shape=jax.ShapeDtypeStruct((M, nc), out_dtype),
        in_specs=_full_specs(operands),
        out_specs=pl.BlockSpec((M, nc), functools.partial(_zero_map, 2)),
    )(*operands)


# ============================================================================
# Parameters (deterministic synthetic init; shapes match the nn.Module).
# ============================================================================
def init_params(seed=0, in_nc=3, out_nc=3, nf=16):
    key = jax.random.PRNGKey(seed)
    keys = iter(jax.random.split(key, 128))

    def cv(cin, cout, k=3, scale=0.05):
        kw, kb = jax.random.split(next(keys))
        w = jax.random.normal(kw, (k, k, cin, cout), jnp.float32) * scale
        b = jax.random.normal(kb, (cout,), jnp.float32) * 0.01
        return (w, b)

    p = {}
    p["conv_first"] = cv(in_nc, nf)
    p["conv_2"] = cv(nf, nf)
    p["HR_conv1"] = cv(nf, nf)
    p["down_conv1"] = cv(nf, nf)
    p["down_conv2"] = cv(nf, nf)
    p["trunk1"] = [cv(nf, nf) for _ in range(4)]   # mulRDBx4 stand-in
    p["trunk2"] = [cv(nf, nf) for _ in range(6)]   # mulRDBx6 stand-in
    p["trunk3"] = [cv(nf, nf) for _ in range(4)]   # mulRDBx4 stand-in
    p["up_conv1"] = cv(nf, nf * 4)
    p["up_conv2"] = cv(nf, nf * 4)
    p["HR_conv2"] = cv(nf, nf)
    p["conv_last"] = cv(nf, out_nc)
    p["up_KIB1"] = cv(nf, nf * 4)
    p["up_KIB2_0"] = cv(nf, nf * 4)
    p["up_KIB2_1"] = cv(nf, nf * 4)
    p["up_KIB3_0"] = cv(nf, nf * 4)
    p["up_KIB3_1"] = cv(nf, nf * 4)
    p["up_KIB4"] = cv(nf, nf * 4)
    for i in range(1, 5):
        p[f"restoration{i}"] = cv(nf, 3)
    p["alpha_0"] = cv(nf, nf)
    p["alpha_1"] = cv(nf, nf)
    p["belta_0"] = cv(nf, nf)
    p["belta_1"] = cv(nf, nf)
    for i in range(1, 4):
        p[f"gammma{i}_0"] = cv(nf, nf, k=1)   # DM_F_1X1 stand-in (1x1 convs)
        p[f"gammma{i}_1"] = cv(nf, nf, k=1)
    return p


def pack_params(p, *, H, W, nf, in_pad=8, out_pad=8):
    """Pack every conv for every (width, stride, epilogue) usage ONCE, on the
    host, so the jitted forward contains no per-conv packing ops."""
    del H
    Wf, W1, W2 = W, W // 2, W // 4
    pk = {}
    conv2 = _pack_conv(p["conv_2"], Wf)            # shared, packed once
    pk["head"] = [_pack_conv(p["conv_first"], Wf, pad_cin_to=in_pad),
                  conv2,
                  _pack_conv(p["HR_conv1"], Wf)]
    pk["tail"] = [conv2,
                  _pack_conv(p["HR_conv2"], Wf),
                  _pack_conv(p["conv_last"], Wf, pad_cout_to=out_pad)]
    pk["down1"] = _pack_conv(p["down_conv1"], Wf, stride=2)
    pk["down2"] = _pack_conv(p["down_conv2"], W1, stride=2)
    pk["trunk1"] = [_pack_conv(c, W1) for c in p["trunk1"]]
    pk["trunk2"] = [_pack_conv(c, W2) for c in p["trunk2"]]   # reused twice
    pk["trunk3"] = [_pack_conv(c, W1) for c in p["trunk3"]]
    for width, tag in ((W1, "W1"), (W2, "W2")):
        pk[f"alpha_{tag}"] = [_pack_conv(p["alpha_0"], width),
                              _pack_conv(p["alpha_1"], width)]
        pk[f"belta_{tag}"] = [_pack_conv(p["belta_0"], width),
                              _pack_conv(p["belta_1"], width)]
    pk["up_KIB1"] = _pack_conv(p["up_KIB1"], W1, ps_nf=nf)
    pk["up_KIB2_0"] = _pack_conv(p["up_KIB2_0"], W2, ps_nf=nf)
    pk["up_KIB2_1"] = _pack_conv(p["up_KIB2_1"], W1, ps_nf=nf)
    pk["up_KIB3_0"] = _pack_conv(p["up_KIB3_0"], W2, ps_nf=nf)
    pk["up_KIB3_1"] = _pack_conv(p["up_KIB3_1"], W1, ps_nf=nf)
    pk["up_KIB4"] = _pack_conv(p["up_KIB4"], W1, ps_nf=nf)
    pk["up_conv1"] = _pack_conv(p["up_conv1"], W2, ps_nf=nf)
    pk["up_conv2"] = _pack_conv(p["up_conv2"], W1, ps_nf=nf)
    for i in range(1, 5):
        pk[f"rest{i}"] = _pack_conv(p[f"restoration{i}"], Wf, pad_cout_to=out_pad)
    for i, width in ((1, Wf), (2, W1), (3, W2)):
        g0w, g0b = _pack_1x1(p[f"gammma{i}_0"], width)
        g1w, g1b = _pack_1x1(p[f"gammma{i}_1"], width)
        pk[f"g{i}"] = (g0w, g0b, g1w, g1b)
    return pk


# ============================================================================
# Forward pass (mirrors HDRUNet.forward; stand-ins noted above).
# ============================================================================
def hdrunet_forward(pk, x_tuple, *, N, H, W, nf, in_nc=3, out_nc=3,
                    in_pad=8, out_pad=8):
    assert H % 4 == 0 and W % 4 == 0, "H, W must be divisible by 4"
    x = x_tuple[0]                                    # forward uses x[0]
    Hf, H1, H2 = H, H // 2, H // 4
    Wf, W1, W2 = W, W // 2, W // 4

    t = jnp.transpose(x, (0, 2, 3, 1))                # NCHW -> NHWC
    t = jnp.pad(t, ((0, 0), (0, 0), (0, 0), (0, in_pad - in_nc)))
    t = t.reshape(N * Hf, Wf * in_pad).astype(jnp.bfloat16)

    def chain(z, layers, rows, flags):
        return conv_chain(z, layers, n_img=N, rows=rows, relu_flags=flags)

    def mod(z, trunk, tag, rows, plus_z=False):
        return modblock(z, pk[trunk], pk[f"alpha_{tag}"], pk[f"belta_{tag}"],
                        n_img=N, rows=rows, plus_z=plus_z)

    def up(z, name, rows_in, w_in, relu=False):
        y = chain(z, [pk[name]], rows_in, (relu,))
        # PixelShuffle(2) is folded into the packed weight columns; the reshape
        # below is a free row-major reinterpretation (no data movement).
        return y.reshape(N * rows_in * 2, w_in * 2 * nf)

    def dm(fea, prev, idx):                           # prev + DM_F_1X1(fea, prev)
        return dm_modulate(fea, prev, *pk[f"g{idx}"])

    fea0 = chain(t, pk["head"], Hf, (True, False, True))
    fea1 = down_conv(fea0, *pk["down1"], n_img=N, rows_in=Hf)
    fea1 = mod(fea1, "trunk1", "W1", H1)
    k = up(fea1, "up_KIB1", H1, W1)
    kib1 = chain(k, [pk["rest1"]], Hf, (False,))

    fea2 = down_conv(fea1, *pk["down2"], n_img=N, rows_in=H1)
    out = mod(fea2, "trunk2", "W2", H2)
    k = up(up(out, "up_KIB2_0", H2, W2), "up_KIB2_1", H1, W1)
    kib2 = chain(k, [pk["rest2"]], Hf, (False,))

    out = mod(out, "trunk2", "W2", H2, plus_z=True)   # trunk2 reused (as in spec)
    k = up(up(out, "up_KIB3_0", H2, W2), "up_KIB3_1", H1, W1)
    kib3 = chain(k, [pk["rest3"]], Hf, (False,))

    out = dm(fea2, out, 3)
    out = up(out, "up_conv1", H2, W2, relu=True)
    out = dm(fea1, out, 2)
    out = mod(out, "trunk3", "W1", H1)
    k = up(out, "up_KIB4", H1, W1)
    kib4 = chain(k, [pk["rest4"]], Hf, (False,))

    out = up(out, "up_conv2", H1, W1, relu=True)
    out = dm(fea0, out, 1)
    out = chain(out, pk["tail"], Hf, (False, True, False))

    def to_nchw(flat):
        z = flat.astype(jnp.float32).reshape(N, Hf, Wf, out_pad)[..., :out_nc]
        return jnp.transpose(z, (0, 3, 1, 2))

    return to_nchw(out), [to_nchw(kib1), to_nchw(kib2), to_nchw(kib3), to_nchw(kib4)]


# ============================================================================
# Self-checks vs. XLA references (bf16-matched operands / intermediates).
# ============================================================================
def _q(a):
    return a.astype(jnp.bfloat16).astype(jnp.float32)


def _ref_conv(x, w, b, stride=1, relu=False):
    y = jax.lax.conv_general_dilated(
        x, w, (stride, stride), ((1, 1), (1, 1)),
        dimension_numbers=("NHWC", "HWIO", "NHWC"),
        precision=jax.lax.Precision.HIGHEST) + b
    return jnp.maximum(y, 0.0) if relu else y


def _ref_ps(y, r=2):
    N, H, W, C4 = y.shape
    c = C4 // (r * r)
    y = y.reshape(N, H, W, c, r, r).transpose(0, 1, 4, 2, 5, 3)
    return y.reshape(N, H * r, W * r, c)


def _self_check():
    N, H, W, C = 2, 16, 16, 16
    ks = jax.random.split(jax.random.PRNGKey(1), 16)
    x = jax.random.normal(ks[0], (N, H, W, C), jnp.float32)
    xf = x.reshape(N * H, W * C).astype(jnp.bfloat16)
    xq = _q(x)

    def rand_conv(k, cin=C, cout=C, kk=3):
        kw, kb = jax.random.split(k)
        return (jax.random.normal(kw, (kk, kk, cin, cout), jnp.float32) * 0.05,
                jax.random.normal(kb, (cout,), jnp.float32) * 0.01)

    # 1) fused 2-conv chain (relu on first), stride 1
    c1, c2 = rand_conv(ks[1]), rand_conv(ks[2])
    got = conv_chain(xf, [_pack_conv(c1, W), _pack_conv(c2, W)],
                     n_img=N, rows=H, relu_flags=(True, False))
    got = got.astype(jnp.float32).reshape(N, H, W, C)
    ref = _ref_conv(_q(_ref_conv(xq, _q(c1[0]), c1[1], relu=True)), _q(c2[0]), c2[1])
    assert float(jnp.max(jnp.abs(got - ref))) < 5e-2, "chain check failed"

    # 2) stride-2 down conv + relu
    got = down_conv(xf, *_pack_conv(c1, W, stride=2), n_img=N, rows_in=H)
    got = got.astype(jnp.float32).reshape(N, H // 2, W // 2, C)
    ref = _ref_conv(xq, _q(c1[0]), c1[1], stride=2, relu=True)
    assert float(jnp.max(jnp.abs(got - ref))) < 5e-2, "stride-2 check failed"

    # 3) up conv with fused PixelShuffle(2)
    cu = rand_conv(ks[3], C, 4 * C)
    got = conv_chain(xf, [_pack_conv(cu, W, ps_nf=C)], n_img=N, rows=H,
                     relu_flags=(False,))
    got = got.astype(jnp.float32).reshape(N, 2 * H, 2 * W, C)
    ref = _ref_ps(_ref_conv(xq, _q(cu[0]), cu[1]))
    assert float(jnp.max(jnp.abs(got - ref))) < 5e-2, "pixel-shuffle check failed"

    # 4) fused DM (1x1 sigmoid gate + residual)
    g0, g1 = rand_conv(ks[4], C, C, kk=1), rand_conv(ks[5], C, C, kk=1)
    prev = jax.random.normal(ks[6], (N, H, W, C), jnp.float32)
    pf = prev.reshape(N * H, W * C).astype(jnp.bfloat16)
    g0p, g1p = _pack_1x1(g0, W), _pack_1x1(g1, W)
    got = dm_modulate(xf, pf, g0p[0], g0p[1], g1p[0], g1p[1])
    got = got.astype(jnp.float32).reshape(N, H, W, C)
    gate = jax.nn.sigmoid(xq @ _q(g0[0].reshape(C, C)) + g0[1])
    pq = _q(prev)
    ref = pq + (_q(pq * gate) @ _q(g1[0].reshape(C, C)) + g1[1])
    assert float(jnp.max(jnp.abs(got - ref))) < 5e-2, "dm check failed"

    # 5) fused modblock (trunk RDB * alpha + belta + z)
    trunk = [rand_conv(k) for k in jax.random.split(ks[7], 4)]
    alpha = [rand_conv(k) for k in jax.random.split(ks[8], 2)]
    belta = [rand_conv(k) for k in jax.random.split(ks[9], 2)]
    got = modblock(xf, [_pack_conv(c, W) for c in trunk],
                   [_pack_conv(c, W) for c in alpha],
                   [_pack_conv(c, W) for c in belta],
                   n_img=N, rows=H, plus_z=True)
    got = got.astype(jnp.float32).reshape(N, H, W, C)
    y = xq
    for (w, b) in trunk[:-1]:
        y = _q(_ref_conv(y, _q(w), b, relu=True))
    tr = xq + 0.2 * _ref_conv(y, _q(trunk[-1][0]), trunk[-1][1])
    a = _ref_conv(_q(_ref_conv(xq, _q(alpha[0][0]), alpha[0][1])),
                  _q(alpha[1][0]), alpha[1][1])
    bt = _ref_conv(_q(_ref_conv(xq, _q(belta[0][0]), belta[0][1])),
                   _q(belta[1][0]), belta[1][1])
    ref = tr * a + bt + xq
    assert float(jnp.max(jnp.abs(got - ref))) < 1e-1, "modblock check failed"


# ============================================================================
if __name__ == "__main__":
    _self_check()

    N, in_nc, out_nc, H, W, nf = 2, 3, 3, 16, 16, 16
    params = init_params(seed=0, in_nc=in_nc, out_nc=out_nc, nf=nf)
    packed = pack_params(params, H=H, W=W, nf=nf)     # packed ONCE, outside jit
    img = jax.random.normal(jax.random.PRNGKey(0), (N, in_nc, H, W), jnp.float32)

    fwd = jax.jit(functools.partial(hdrunet_forward, N=N, H=H, W=W, nf=nf,
                                    in_nc=in_nc, out_nc=out_nc))
    out, up_kib = fwd(packed, (img,))

    out = jax.block_until_ready(out)
    up_kib = [jax.block_until_ready(k) for k in up_kib]

    assert out.shape == (N, out_nc, H, W), out.shape
    assert all(k.shape == (N, out_nc, H, W) for k in up_kib)
    assert bool(jnp.all(jnp.isfinite(out)))
    assert all(bool(jnp.all(jnp.isfinite(k))) for k in up_kib)

    print("KERNEL_OK")
</pallas_src>

<mosaic_0001>
module attributes {stable_mosaic.version = 11 : i64} {
  func.func @kernel(%arg0: i32, %arg1: memref<32x256xbf16, #tpu.memory_space<vmem>>, %arg2: memref<3x256x256xbf16, #tpu.memory_space<vmem>>, %arg3: memref<1x256xf32, #tpu.memory_space<vmem>>, %arg4: memref<3x256x256xbf16, #tpu.memory_space<vmem>>, %arg5: memref<1x256xf32, #tpu.memory_space<vmem>>, %arg6: memref<32x256xbf16, #tpu.memory_space<vmem>>) attributes {dimension_semantics = [#tpu.dimension_semantics<arbitrary>], iteration_bounds = array<i64: 1>, scalar_prefetch = 0 : i64, scratch_operands = 0 : i64, tpu.core_type = #tpu.core_type<tc>, window_params = [{pipeline_mode = #tpu.pipeline_mode<synchronous>, transform_indices = @transform_0, window_bounds = array<i64: 32, 256>}, {pipeline_mode = #tpu.pipeline_mode<synchronous>, transform_indices = @transform_1, window_bounds = array<i64: 3, 256, 256>}, {pipeline_mode = #tpu.pipeline_mode<synchronous>, transform_indices = @transform_2, window_bounds = array<i64: 1, 256>}, {pipeline_mode = #tpu.pipeline_mode<synchronous>, transform_indices = @transform_3, window_bounds = array<i64: 3, 256, 256>}, {pipeline_mode = #tpu.pipeline_mode<synchronous>, transform_indices = @transform_4, window_bounds = array<i64: 1, 256>}, {pipeline_mode = #tpu.pipeline_mode<synchronous>, transform_indices = @transform_5, window_bounds = array<i64: 32, 256>}]} {
    %c0 = arith.constant 0 : index
    %c0_0 = arith.constant 0 : index
    %0 = vector.load %arg1[%c0, %c0_0] : memref<32x256xbf16, #tpu.memory_space<vmem>>, vector<32x256xbf16>
    %c0_1 = arith.constant 0 : index
    %c0_2 = arith.constant 0 : index
    %c0_3 = arith.constant 0 : index
    %1 = vector.load %arg2[%c0_1, %c0_2, %c0_3] : memref<3x256x256xbf16, #tpu.memory_space<vmem>>, vector<1x256x256xbf16>
    %2 = vector.shape_cast %1 : vector<1x256x256xbf16> to vector<256x256xbf16>
    %cst = arith.constant dense<0.000000e+00> : vector<32x256xf32>
    %3 = tpu.matmul %0, %2, %cst {dimension_numbers = #tpu.dot_dimension_numbers<[1], [0], [0], [1], [0, 0, 1, 1], [], []>} : vector<32x256xbf16>, vector<256x256xbf16>, vector<32x256xf32> -> vector<32x256xf32>
    %c1 = arith.constant 1 : index
    %c0_4 = arith.constant 0 : index
    %c0_5 = arith.constant 0 : index
    %4 = vector.load %arg2[%c1, %c0_4, %c0_5] : memref<3x256x256xbf16, #tpu.memory_space<vmem>>, vector<1x256x256xbf16>
    %5 = vector.shape_cast %4 : vector<1x256x256xbf16> to vector<256x256xbf16>
    %cst_6 = arith.constant dense<0.000000e+00> : vector<32x256xf32>
    %6 = tpu.matmul %0, %5, %cst_6 {dimension_numbers = #tpu.dot_dimension_numbers<[1], [0], [0], [1], [0, 0, 1, 1], [], []>} : vector<32x256xbf16>, vector<256x256xbf16>, vector<32x256xf32> -> vector<32x256xf32>
    %c2 = arith.constant 2 : index
    %c0_7 = arith.constant 0 : index
    %c0_8 = arith.constant 0 : index
    %7 = vector.load %arg2[%c2, %c0_7, %c0_8] : memref<3x256x256xbf16, #tpu.memory_space<vmem>>, vector<1x256x256xbf16>
    %8 = vector.shape_cast %7 : vector<1x256x256xbf16> to vector<256x256xbf16>
    %cst_9 = arith.constant dense<0.000000e+00> : vector<32x256xf32>
    %9 = tpu.matmul %0, %8, %cst_9 {dimension_numbers = #tpu.dot_dimension_numbers<[1], [0], [0], [1], [0, 0, 1, 1], [], []>} : vector<32x256xbf16>, vector<256x256xbf16>, vector<32x256xf32> -> vector<32x256xf32>
    %cst_10 = arith.constant 0.000000e+00 : f32
    %10 = vector.broadcast %cst_10 : f32 to vector<1x256xf32>
    %11 = vector.extract_strided_slice %3 {offsets = [0, 0], sizes = [15, 256], strides = [1, 1]} : vector<32x256xf32> to vector<15x256xf32>
    %12 = vector.extract_strided_slice %3 {offsets = [16, 0], sizes = [15, 256], strides = [1, 1]} : vector<32x256xf32> to vector<15x256xf32>
    %13 = tpu.concatenate %10, %11, %10, %12 in 0 : vector<1x256xf32>, vector<15x256xf32>, vector<1x256xf32>, vector<15x256xf32> -> vector<32x256xf32>
    %14 = arith.addf %6, %13 : vector<32x256xf32>
    %cst_11 = arith.constant 0.000000e+00 : f32
    %15 = vector.broadcast %cst_11 : f32 to vector<1x256xf32>
    %16 = vector.extract_strided_slice %9 {offsets = [1, 0], sizes = [15, 256], strides = [1, 1]} : vector<32x256xf32> to vector<15x256xf32>
    %17 = vector.extract_strided_slice %9 {offsets = [17, 0], sizes = [15, 256], strides = [1, 1]} : vector<32x256xf32> to vector<15x256xf32>
    %18 = tpu.concatenate %16, %15, %17, %15 in 0 : vector<15x256xf32>, vector<1x256xf32>, vector<15x256xf32>, vector<1x256xf32> -> vector<32x256xf32>
    %19 = arith.addf %14, %18 : vector<32x256xf32>
    %c0_12 = arith.constant 0 : index
    %c0_13 = arith.constant 0 : index
    %20 = vector.load %arg3[%c0_12, %c0_13] : memref<1x256xf32, #tpu.memory_space<vmem>>, vector<1x256xf32>
    %21 = vector.broadcast %20 : vector<1x256xf32> to vector<32x256xf32>
    %22 = arith.addf %19, %21 : vector<32x256xf32>
    %cst_14 = arith.constant 0.000000e+00 : f32
    %23 = vector.broadcast %cst_14 : f32 to vector<32x256xf32>
    %24 = arith.maximumf %22, %23 : vector<32x256xf32>
    %25 = arith.truncf %24 : vector<32x256xf32> to vector<32x256xbf16>
    %c0_15 = arith.constant 0 : index
    %c0_16 = arith.constant 0 : index
    %c0_17 = arith.constant 0 : index
    %26 = vector.load %arg4[%c0_15, %c0_16, %c0_17] : memref<3x256x256xbf16, #tpu.memory_space<vmem>>, vector<1x256x256xbf16>
    %27 = vector.shape_cast %26 : vector<1x256x256xbf16> to vector<256x256xbf16>
    %cst_18 = arith.constant dense<0.000000e+00> : vector<32x256xf32>
    %28 = tpu.matmul %25, %27, %cst_18 {dimension_numbers = #tpu.dot_dimension_numbers<[1], [0], [0], [1], [0, 0, 1, 1], [], []>} : vector<32x256xbf16>, vector<256x256xbf16>, vector<32x256xf32> -> vector<32x256xf32>
    %c1_19 = arith.constant 1 : index
    %c0_20 = arith.constant 0 : index
    %c0_21 = arith.constant 0 : index
    %29 = vector.load %arg4[%c1_19, %c0_20, %c0_21] : memref<3x256x256xbf16, #tpu.memory_space<vmem>>, vector<1x256x256xbf16>
    %30 = vector.shape_cast %29 : vector<1x256x256xbf16> to vector<256x256xbf16>
    %cst_22 = arith.constant dense<0.000000e+00> : vector<32x256xf32>
    %31 = tpu.matmul %25, %30, %cst_22 {dimension_numbers = #tpu.dot_dimension_numbers<[1], [0], [0], [1], [0, 0, 1, 1], [], []>} : vector<32x256xbf16>, vector<256x256xbf16>, vector<32x256xf32> -> vector<32x256xf32>
    %c2_23 = arith.constant 2 : index
    %c0_24 = arith.constant 0 : index
    %c0_25 = arith.constant 0 : index
    %32 = vector.load %arg4[%c2_23, %c0_24, %c0_25] : memref<3x256x256xbf16, #tpu.memory_space<vmem>>, vector<1x256x256xbf16>
    %33 = vector.shape_cast %32 : vector<1x256x256xbf16> to vector<256x256xbf16>
    %cst_26 = arith.constant dense<0.000000e+00> : vector<32x256xf32>
    %34 = tpu.matmul %25, %33, %cst_26 {dimension_numbers = #tpu.dot_dimension_numbers<[1], [0], [0], [1], [0, 0, 1, 1], [], []>} : vector<32x256xbf16>, vector<256x256xbf16>, vector<32x256xf32> -> vector<32x256xf32>
    %cst_27 = arith.constant 0.000000e+00 : f32
    %35 = vector.broadcast %cst_27 : f32 to vector<1x256xf32>
    %36 = vector.extract_strided_slice %28 {offsets = [0, 0], sizes = [15, 256], strides = [1, 1]} : vector<32x256xf32> to vector<15x256xf32>
    %37 = vector.extract_strided_slice %28 {offsets = [16, 0], sizes = [15, 256], strides = [1, 1]} : vector<32x256xf32> to vector<15x256xf32>
    %38 = tpu.concatenate %35, %36, %35, %37 in 0 : vector<1x256xf32>, vector<15x256xf32>, vector<1x256xf32>, vector<15x256xf32> -> vector<32x256xf32>
    %39 = arith.addf %31, %38 : vector<32x256xf32>
    %cst_28 = arith.constant 0.000000e+00 : f32
    %40 = vector.broadcast %cst_28 : f32 to vector<1x256xf32>
    %41 = vector.extract_strided_slice %34 {offsets = [1, 0], sizes = [15, 256], strides = [1, 1]} : vector<32x256xf32> to vector<15x256xf32>
    %42 = vector.extract_strided_slice %34 {offsets = [17, 0], sizes = [15, 256], strides = [1, 1]} : vector<32x256xf32> to vector<15x256xf32>
    %43 = tpu.concatenate %41, %40, %42, %40 in 0 : vector<15x256xf32>, vector<1x256xf32>, vector<15x256xf32>, vector<1x256xf32> -> vector<32x256xf32>
    %44 = arith.addf %39, %43 : vector<32x256xf32>
    %c0_29 = arith.constant 0 : index
    %c0_30 = arith.constant 0 : index
    %45 = vector.load %arg5[%c0_29, %c0_30] : memref<1x256xf32, #tpu.memory_space<vmem>>, vector<1x256xf32>
    %46 = vector.broadcast %45 : vector<1x256xf32> to vector<32x256xf32>
    %47 = arith.addf %44, %46 : vector<32x256xf32>
    %48 = arith.truncf %47 : vector<32x256xf32> to vector<32x256xbf16>
    %c0_31 = arith.constant 0 : index
    %c0_32 = arith.constant 0 : index
    %49 = vector.load %arg6[%c0_31, %c0_32] : memref<32x256xbf16, #tpu.memory_space<vmem>>, vector<32x256xbf16>
    tpu.vector_store %arg6[%c0_31, %c0_32], %48 {strides = array<i32>} : memref<32x256xbf16, #tpu.memory_space<vmem>>, vector<32x256xbf16>,
    return
  }
  func.func @transform_0(%arg0: i32) -> (i32, i32) {
    %c0_i32 = arith.constant 0 : i32
    %c0_i32_0 = arith.constant 0 : i32
    %c0_i32_1 = arith.constant 0 : i32
    return %c0_i32, %c0_i32_0 : i32, i32
  }
  func.func @transform_1(%arg0: i32) -> (i32, i32, i32) {
    %c0_i32 = arith.constant 0 : i32
    %c0_i32_0 = arith.constant 0 : i32
    %c0_i32_1 = arith.constant 0 : i32
    %c0_i32_2 = arith.constant 0 : i32
    return %c0_i32, %c0_i32_0, %c0_i32_1 : i32, i32, i32
  }
  func.func @transform_2(%arg0: i32) -> (i32, i32) {
    %c0_i32 = arith.constant 0 : i32
    %c0_i32_0 = arith.constant 0 : i32
    %c0_i32_1 = arith.constant 0 : i32
    return %c0_i32, %c0_i32_0 : i32, i32
  }
  func.func @transform_3(%arg0: i32) -> (i32, i32, i32) {
    %c0_i32 = arith.constant 0 : i32
    %c0_i32_0 = arith.constant 0 : i32
    %c0_i32_1 = arith.constant 0 : i32
    %c0_i32_2 = arith.constant 0 : i32
    return %c0_i32, %c0_i32_0, %c0_i32_1 : i32, i32, i32
  }
  func.func @transform_4(%arg0: i32) -> (i32, i32) {
    %c0_i32 = arith.constant 0 : i32
    %c0_i32_0 = arith.constant 0 : i32
    %c0_i32_1 = arith.constant 0 : i32
    return %c0_i32, %c0_i32_0 : i32, i32
  }
  func.func @transform_5(%arg0: i32) -> (i32, i32) {
    %c0_i32 = arith.constant 0 : i32
    %c0_i32_0 = arith.constant 0 : i32
    %c0_i32_1 = arith.constant 0 : i32
    return %c0_i32, %c0_i32_0 : i32, i32
  }
}

</mosaic_0001>

<llo_original>
// kernel: tpu_custom_call.1
$region0: #{tpu_custom_call.1}
  #allocation0 [shape = 'u32[]', space=smem, size = 0x4, offset = 0x4, fixed_abs, tag = 'smem constant byte address 0x4 - core index']
  #allocation1 [shape = 'u32[72,128]{1,0:T(1,128)}', space=vmem, size = 0x9000, scoped, tag = 'internal scratch']
  %s0 = inlined_call_operand.hbm [shape: bf16[32,256], index: 0, kind: input, shape index: {}]
  %s1 = inlined_call_operand.hbm [shape: bf16[3,256,256], index: 1, kind: input, shape index: {}]
  %s2 = inlined_call_operand.hbm [shape: f32[1,256], index: 2, kind: input, shape index: {}]
  %s3 = inlined_call_operand.hbm [shape: bf16[3,256,256], index: 3, kind: input, shape index: {}]
  %s4 = inlined_call_operand.vmem [shape: f32[1,256], index: 4, kind: input, shape index: {}]
  %s5 = inlined_call_operand.hbm [shape: bf16[32,256], index: 5, kind: output, shape index: {}]
  %s6 = sld [smem:[#allocation0]]
  $region46: #{tpu_custom_call.1} parent=0
    _
  %s8 = ssub.s32 1, %s6
  %s9 = scalar_select 0, %s8, %s6
  $region1: #{tpu_custom_call.1} parent=0
    #allocation2 [shape = 'u8[16384]{0}', space=vmem, size = 0x4000, scoped, tag = 'input window, operand 0, single buffered']
    #allocation3 [shape = 's32[1]{0}', space=sflag, size = 0x4, scoped, tag = 'scoped memory for tpu_custom_call.1']
    #allocation4 [shape = 's32[1]{0}', space=sflag, size = 0x4, scoped, tag = 'scoped memory for tpu_custom_call.1']
    #allocation5 [shape = 'u8[393216]{0}', space=vmem, size = 0x60000, scoped, tag = 'input window, operand 1, single buffered']
    #allocation6 [shape = 's32[1]{0}', space=sflag, size = 0x4, scoped, tag = 'scoped memory for tpu_custom_call.1']
    #allocation7 [shape = 'u8[1024]{0}', space=vmem, size = 0x400, scoped, tag = 'input window, operand 2, single buffered']
    #allocation8 [shape = 'u8[393216]{0}', space=vmem, size = 0x60000, scoped, tag = 'input window, operand 3, single buffered']
    #allocation9 [shape = 's32[1]{0}', space=sflag, size = 0x4, scoped, tag = 'scoped memory for tpu_custom_call.1']
    #allocation10 [shape = 'u8[16384]{0}', space=vmem, size = 0x4000, scoped, tag = 'output window, operand 0, single buffered']
    %10 = vsyncpa [#allocation3], 0
    %11 = vsyncpa [#allocation6], 0
    %12 = vsyncpa [#allocation9], 0
    %13 = vsyncpa [#allocation4], 0
    // Predicated region
    $region2: #{tpu_custom_call.1} parent=1 // pred_check
      _
    $region3: #{tpu_custom_call.1} parent=1 // pred_check_branch
      %15 = sbr.rel (0) target = $region5
    $region4: #{tpu_custom_call.1} parent=1 // pred_region
      %17 = vsyncadd [#allocation3], 0
      %s18 = sshll.u32 %s0, 4
      %s19 = int_to_ptr.hbm [resolvable:$true] %s18
      %s20 = sshll.u32 [#allocation2], 4
      %s21 = int_to_ptr.vmem [resolvable:$true] %s20
      %26 = dma.hbm_to_vmem [thread:$0]  %s19, 512, %s21, [#allocation3], 128, 128, 8
    $region5: #{tpu_custom_call.1} parent=1 // pred_fallthru
      _
    // Predicated region
    $region6: #{tpu_custom_call.1} parent=1 // pred_check
      _
    $region7: #{tpu_custom_call.1} parent=1 // pred_check_branch
      %28 = sbr.rel (0) target = $region9
    $region8: #{tpu_custom_call.1} parent=1 // pred_region
      %30 = vsyncadd [#allocation6], 0
      %s31 = sshll.u32 %s1, 4
      %s32 = int_to_ptr.hbm [resolvable:$true] %s31
      %s33 = sshll.u32 [#allocation5], 4
      %s34 = int_to_ptr.vmem [resolvable:$true] %s33
      %39 = dma.hbm_to_vmem [thread:$0]  %s32, 12288, %s34, [#allocation6], 128, 128, 8
    $region9: #{tpu_custom_call.1} parent=1 // pred_fallthru
      _
    // Predicated region
    $region10: #{tpu_custom_call.1} parent=1 // pred_check
      _
    $region11: #{tpu_custom_call.1} parent=1 // pred_check_branch
      %41 = sbr.rel (0) target = $region13
    $region12: #{tpu_custom_call.1} parent=1 // pred_region
      %43 = vsyncadd [#allocation6], 0
      %s45 = sshll.u32 %s2, 4
      %s46 = int_to_ptr.hbm [resolvable:$true] %s45
      %s47 = sshll.u32 [#allocation7], 4
      %s48 = int_to_ptr.vmem [resolvable:$true] %s47
      %50 = dma.hbm_to_vmem [thread:$0]  %s46, 32, %s48, [#allocation6]
    $region13: #{tpu_custom_call.1} parent=1 // pred_fallthru
      _
    // Predicated region
    $region14: #{tpu_custom_call.1} parent=1 // pred_check
      _
    $region15: #{tpu_custom_call.1} parent=1 // pred_check_branch
      %52 = sbr.rel (0) target = $region17
    $region16: #{tpu_custom_call.1} parent=1 // pred_region
      %54 = vsyncadd [#allocation9], 0
      %s55 = sshll.u32 %s3, 4
      %s56 = int_to_ptr.hbm [resolvable:$true] %s55
      %s57 = sshll.u32 [#allocation8], 4
      %s58 = int_to_ptr.vmem [resolvable:$true] %s57
      %63 = dma.hbm_to_vmem [thread:$0]  %s56, 12288, %s58, [#allocation9], 128, 128, 8
    $region17: #{tpu_custom_call.1} parent=1 // pred_fallthru
      _
    // Predicated region
    $region18: #{tpu_custom_call.1} parent=1 // pred_check
      _
    $region19: #{tpu_custom_call.1} parent=1 // pred_check_branch
      %65 = sbr.rel (0) target = $region21
    $region20: #{tpu_custom_call.1} parent=1 // pred_region
      _
    $region21: #{tpu_custom_call.1} parent=1 // pred_fallthru
      _
    // Predicated region
    $region22: #{tpu_custom_call.1} parent=1 // pred_check
      _
    $region23: #{tpu_custom_call.1} parent=1 // pred_check_branch
      %67 = sbr.rel (0) target = $region25
    $region24: #{tpu_custom_call.1} parent=1 // pred_region
      %69 = dma.done [#allocation3], 512
    $region25: #{tpu_custom_call.1} parent=1 // pred_fallthru
      _
    // Predicated region
    $region26: #{tpu_custom_call.1} parent=1 // pred_check
      _
    $region27: #{tpu_custom_call.1} parent=1 // pred_check_branch
      %71 = sbr.rel (0) target = $region29
    $region28: #{tpu_custom_call.1} parent=1 // pred_region
      %73 = dma.done [#allocation6], 12288
    $region29: #{tpu_custom_call.1} parent=1 // pred_fallthru
      _
    // Predicated region
    $region30: #{tpu_custom_call.1} parent=1 // pred_check
      _
    $region31: #{tpu_custom_call.1} parent=1 // pred_check_branch
      %75 = sbr.rel (0) target = $region33
    $region32: #{tpu_custom_call.1} parent=1 // pred_region
      %77 = dma.done [#allocation6], 32
    $region33: #{tpu_custom_call.1} parent=1 // pred_fallthru
      _
    // Predicated region
    $region34: #{tpu_custom_call.1} parent=1 // pred_check
      _
    $region35: #{tpu_custom_call.1} parent=1 // pred_check_branch
      %79 = sbr.rel (0) target = $region37
    $region36: #{tpu_custom_call.1} parent=1 // pred_region
      %81 = dma.done [#allocation9], 12288
    $region37: #{tpu_custom_call.1} parent=1 // pred_fallthru
      _
    %v82 = vld [vmem:[#allocation2] sm:$0xff]
    %v83 = vld [vmem:[#allocation2 + $0x8] sm:$0xff]
    %v84 = vld [vmem:[#allocation2 + $0x10] sm:$0xff]
    %v85 = vld [vmem:[#allocation2 + $0x18] sm:$0xff]
    %v86 = vld [vmem:[#allocation5] sm:$0xff]
    %v87 = vld [vmem:[#allocation5 + $0x8] sm:$0xff]
    %v88 = vld [vmem:[#allocation5 + $0x10] sm:$0xff]
    %v89 = vld [vmem:[#allocation5 + $0x18] sm:$0xff]
    %v90 = vld [vmem:[#allocation5 + $0x20] sm:$0xff]
    %v91 = vld [vmem:[#allocation5 + $0x28] sm:$0xff]
    %v92 = vld [vmem:[#allocation5 + $0x30] sm:$0xff]
    %v93 = vld [vmem:[#allocation5 + $0x38] sm:$0xff]
    %v94 = vld [vmem:[#allocation5 + $0x40] sm:$0xff]
    %v95 = vld [vmem:[#allocation5 + $0x48] sm:$0xff]
    %v96 = vld [vmem:[#allocation5 + $0x50] sm:$0xff]
    %v97 = vld [vmem:[#allocation5 + $0x58] sm:$0xff]
    %v98 = vld [vmem:[#allocation5 + $0x60] sm:$0xff]
    %v99 = vld [vmem:[#allocation5 + $0x68] sm:$0xff]
    %v100 = vld [vmem:[#allocation5 + $0x70] sm:$0xff]
    %v101 = vld [vmem:[#allocation5 + $0x78] sm:$0xff]
    %v102 = vld [vmem:[#allocation5 + $0x80] sm:$0xff]
    %v103 = vld [vmem:[#allocation5 + $0x88] sm:$0xff]
    %v104 = vld [vmem:[#allocation5 + $0x90] sm:$0xff]
    %v105 = vld [vmem:[#allocation5 + $0x98] sm:$0xff]
    %v106 = vld [vmem:[#allocation5 + $0xa0] sm:$0xff]
    %v107 = vld [vmem:[#allocation5 + $0xa8] sm:$0xff]
    %v108 = vld [vmem:[#allocation5 + $0xb0] sm:$0xff]
    %v109 = vld [vmem:[#allocation5 + $0xb8] sm:$0xff]
    %v110 = vld [vmem:[#allocation5 + $0xc0] sm:$0xff]
    %v111 = vld [vmem:[#allocation5 + $0xc8] sm:$0xff]
    %v112 = vld [vmem:[#allocation5 + $0xd0] sm:$0xff]
    %v113 = vld [vmem:[#allocation5 + $0xd8] sm:$0xff]
    %v114 = vld [vmem:[#allocation5 + $0xe0] sm:$0xff]
    %v115 = vld [vmem:[#allocation5 + $0xe8] sm:$0xff]
    %v116 = vld [vmem:[#allocation5 + $0xf0] sm:$0xff]
    %v117 = vld [vmem:[#allocation5 + $0xf8] sm:$0xff]
    %v122 = vunpack.c.l.b16 %v82
    %v123 = vunpack.c.h.b16 %v82
    %v124 = vunpack.c.l.b16 %v83
    %v125 = vunpack.c.h.b16 %v83
    %v126 = vunpack.c.l.b16 %v84
    %v127 = vunpack.c.h.b16 %v84
    %v128 = vunpack.c.l.b16 %v85
    %v129 = vunpack.c.h.b16 %v85
    %v130 = vpack.c.b16 %v124, %v122
    %v131 = vpack.c.b16 %v125, %v123
    %v132 = vpack.c.b16 %v128, %v126
    %v133 = vpack.c.b16 %v129, %v127
    %v170 = vunpack.c.l.b16 %v86
    %v171 = vunpack.c.h.b16 %v86
    %v172 = vunpack.c.l.b16 %v87
    %v173 = vunpack.c.h.b16 %v87
    %v174 = vunpack.c.l.b16 %v88
    %v175 = vunpack.c.h.b16 %v88
    %v176 = vunpack.c.l.b16 %v89
    %v177 = vunpack.c.h.b16 %v89
    %v178 = vunpack.c.l.b16 %v90
    %v179 = vunpack.c.h.b16 %v90
    %v180 = vunpack.c.l.b16 %v91
    %v181 = vunpack.c.h.b16 %v91
    %v182 = vunpack.c.l.b16 %v92
    %v183 = vunpack.c.h.b16 %v92
    %v184 = vunpack.c.l.b16 %v93
    %v185 = vunpack.c.h.b16 %v93
    %v186 = vunpack.c.l.b16 %v94
    %v187 = vunpack.c.h.b16 %v94
    %v188 = vunpack.c.l.b16 %v95
    %v189 = vunpack.c.h.b16 %v95
    %v190 = vunpack.c.l.b16 %v96
    %v191 = vunpack.c.h.b16 %v96
    %v192 = vunpack.c.l.b16 %v97
    %v193 = vunpack.c.h.b16 %v97
    %v194 = vunpack.c.l.b16 %v98
    %v195 = vunpack.c.h.b16 %v98
    %v196 = vunpack.c.l.b16 %v99
    %v197 = vunpack.c.h.b16 %v99
    %v198 = vunpack.c.l.b16 %v100
    %v199 = vunpack.c.h.b16 %v100
    %v200 = vunpack.c.l.b16 %v101
    %v201 = vunpack.c.h.b16 %v101
    %v202 = vunpack.c.l.b16 %v102
    %v203 = vunpack.c.h.b16 %v102
    %v204 = vunpack.c.l.b16 %v103
    %v205 = vunpack.c.h.b16 %v103
    %v206 = vunpack.c.l.b16 %v104
    %v207 = vunpack.c.h.b16 %v104
    %v208 = vunpack.c.l.b16 %v105
    %v209 = vunpack.c.h.b16 %v105
    %v210 = vunpack.c.l.b16 %v106
    %v211 = vunpack.c.h.b16 %v106
    %v212 = vunpack.c.l.b16 %v107
    %v213 = vunpack.c.h.b16 %v107
    %v214 = vunpack.c.l.b16 %v108
    %v215 = vunpack.c.h.b16 %v108
    %v216 = vunpack.c.l.b16 %v109
    %v217 = vunpack.c.h.b16 %v109
    %v218 = vunpack.c.l.b16 %v110
    %v219 = vunpack.c.h.b16 %v110
    %v220 = vunpack.c.l.b16 %v111
    %v221 = vunpack.c.h.b16 %v111
    %v222 = vunpack.c.l.b16 %v112
    %v223 = vunpack.c.h.b16 %v112
    %v224 = vunpack.c.l.b16 %v113
    %v225 = vunpack.c.h.b16 %v113
    %v226 = vunpack.c.l.b16 %v114
    %v227 = vunpack.c.h.b16 %v114
    %v228 = vunpack.c.l.b16 %v115
    %v229 = vunpack.c.h.b16 %v115
    %v230 = vunpack.c.l.b16 %v116
    %v231 = vunpack.c.h.b16 %v116
    %v232 = vunpack.c.l.b16 %v117
    %v233 = vunpack.c.h.b16 %v117
    %v234 = vpack.c.b16 %v172, %v170
    %v235 = vpack.c.b16 %v173, %v171
    %v236 = vpack.c.b16 %v176, %v174
    %v237 = vpack.c.b16 %v177, %v175
    %v238 = vpack.c.b16 %v180, %v178
    %v239 = vpack.c.b16 %v181, %v179
    %v240 = vpack.c.b16 %v184, %v182
    %v241 = vpack.c.b16 %v185, %v183
    %v242 = vpack.c.b16 %v188, %v186
    %v243 = vpack.c.b16 %v189, %v187
    %v244 = vpack.c.b16 %v192, %v190
    %v245 = vpack.c.b16 %v193, %v191
    %v246 = vpack.c.b16 %v196, %v194
    %v247 = vpack.c.b16 %v197, %v195
    %v248 = vpack.c.b16 %v200, %v198
    %v249 = vpack.c.b16 %v201, %v199
    %v250 = vpack.c.b16 %v204, %v202
    %v251 = vpack.c.b16 %v205, %v203
    %v252 = vpack.c.b16 %v208, %v206
    %v253 = vpack.c.b16 %v209, %v207
    %v254 = vpack.c.b16 %v212, %v210
    %v255 = vpack.c.b16 %v213, %v211
    %v256 = vpack.c.b16 %v216, %v214
    %v257 = vpack.c.b16 %v217, %v215
    %v258 = vpack.c.b16 %v220, %v218
    %v259 = vpack.c.b16 %v221, %v219
    %v260 = vpack.c.b16 %v224, %v222
    %v261 = vpack.c.b16 %v225, %v223
    %v262 = vpack.c.b16 %v228, %v226
    %v263 = vpack.c.b16 %v229, %v227
    %v264 = vpack.c.b16 %v232, %v230
    %v265 = vpack.c.b16 %v233, %v231
    %298 = vmatpush.bf16.msra.mxu0 %v248
    %299 = vmatpush.bf16.msra.mxu0 %v246
    %300 = vmatpush.bf16.msra.mxu0 %v244
    %301 = vmatpush.bf16.msra.mxu0 %v242
    %302 = vmatpush.bf16.msra.mxu0 %v240
    %303 = vmatpush.bf16.msra.mxu0 %v238
    %304 = vmatpush.bf16.msra.mxu0 %v236
    %305 = vmatpush.bf16.msra.mxu0 %v234
    %306 = vmatmul.bf16.gmra.mxu0 %v130
    %v307 = vpop.f32.mrf.mxu0
    %v308 = vadd.f32 0.0, %v307
    %v309 = vpop.f32.mrf.mxu0
    %v310 = vadd.f32 0.0, %v309
    %311 = vmatmul.bf16.gmra.mxu0 %v132
    %v312 = vpop.f32.mrf.mxu0
    %v313 = vadd.f32 0.0, %v312
    %v314 = vpop.f32.mrf.mxu0
    %v315 = vadd.f32 0.0, %v314
    %316 = vdwg.mxu0
    %317 = vmatpush.bf16.msra.mxu0 %v264
    %318 = vmatpush.bf16.msra.mxu0 %v262
    %319 = vmatpush.bf16.msra.mxu0 %v260
    %320 = vmatpush.bf16.msra.mxu0 %v258
    %321 = vmatpush.bf16.msra.mxu0 %v256
    %322 = vmatpush.bf16.msra.mxu0 %v254
    %323 = vmatpush.bf16.msra.mxu0 %v252
    %324 = vmatpush.bf16.msra.mxu0 %v250
    %325 = vmatmul.bf16.gmra.mxu0 %v131
    %v326 = vpop.f32.mrf.mxu0
    %v327 = vadd.f32 %v308, %v326
    %v328 = vpop.f32.mrf.mxu0
    %v329 = vadd.f32 %v310, %v328
    %330 = vmatmul.bf16.gmra.mxu0 %v133
    %v331 = vpop.f32.mrf.mxu0
    %v332 = vadd.f32 %v313, %v331
    %v333 = vpop.f32.mrf.mxu0
    %v334 = vadd.f32 %v315, %v333
    %335 = vdwg.mxu0
    %336 = vmatpush.bf16.msra.mxu0 %v249
    %337 = vmatpush.bf16.msra.mxu0 %v247
    %338 = vmatpush.bf16.msra.mxu0 %v245
    %339 = vmatpush.bf16.msra.mxu0 %v243
    %340 = vmatpush.bf16.msra.mxu0 %v241
    %341 = vmatpush.bf16.msra.mxu0 %v239
    %342 = vmatpush.bf16.msra.mxu0 %v237
    %343 = vmatpush.bf16.msra.mxu0 %v235
    %344 = vmatmul.bf16.gmra.mxu0 %v130
    %v345 = vpop.f32.mrf.mxu0
    %v346 = vadd.f32 0.0, %v345
    %v347 = vpop.f32.mrf.mxu0
    %v348 = vadd.f32 0.0, %v347
    %349 = vmatmul.bf16.gmra.mxu0 %v132
    %v350 = vpop.f32.mrf.mxu0
    %v351 = vadd.f32 0.0, %v350
    %v352 = vpop.f32.mrf.mxu0
    %v353 = vadd.f32 0.0, %v352
    %354 = vdwg.mxu0
    %355 = vmatpush.bf16.msra.mxu0 %v265
    %356 = vmatpush.bf16.msra.mxu0 %v263
    %357 = vmatpush.bf16.msra.mxu0 %v261
    %358 = vmatpush.bf16.msra.mxu0 %v259
    %359 = vmatpush.bf16.msra.mxu0 %v257
    %360 = vmatpush.bf16.msra.mxu0 %v255
    %361 = vmatpush.bf16.msra.mxu0 %v253
    %362 = vmatpush.bf16.msra.mxu0 %v251
    %363 = vmatmul.bf16.gmra.mxu0 %v131
    %v364 = vpop.f32.mrf.mxu0
    %v365 = vadd.f32 %v346, %v364
    %v366 = vpop.f32.mrf.mxu0
    %v367 = vadd.f32 %v348, %v366
    %368 = vmatmul.bf16.gmra.mxu0 %v133
    %v369 = vpop.f32.mrf.mxu0
    %v370 = vadd.f32 %v351, %v369
    %v371 = vpop.f32.mrf.mxu0
    %v372 = vadd.f32 %v353, %v371
    %373 = vdwg.mxu0
    %s374 = scalar_lea.vmem [#allocation5], 256
    %v375 = vld [vmem:[%s374] sm:$0xff]
    %v376 = vld [vmem:[%s374 + $0x8] sm:$0xff]
    %v377 = vld [vmem:[%s374 + $0x10] sm:$0xff]
    %v378 = vld [vmem:[%s374 + $0x18] sm:$0xff]
    %v379 = vld [vmem:[%s374 + $0x20] sm:$0xff]
    %v380 = vld [vmem:[%s374 + $0x28] sm:$0xff]
    %v381 = vld [vmem:[%s374 + $0x30] sm:$0xff]
    %v382 = vld [vmem:[%s374 + $0x38] sm:$0xff]
    %v383 = vld [vmem:[%s374 + $0x40] sm:$0xff]
    %v384 = vld [vmem:[%s374 + $0x48] sm:$0xff]
    %v385 = vld [vmem:[%s374 + $0x50] sm:$0xff]
    %v386 = vld [vmem:[%s374 + $0x58] sm:$0xff]
    %v387 = vld [vmem:[%s374 + $0x60] sm:$0xff]
    %v388 = vld [vmem:[%s374 + $0x68] sm:$0xff]
    %v389 = vld [vmem:[%s374 + $0x70] sm:$0xff]
    %v390 = vld [vmem:[%s374 + $0x78] sm:$0xff]
    %v391 = vld [vmem:[%s374 + $0x80] sm:$0xff]
    %v392 = vld [vmem:[%s374 + $0x88] sm:$0xff]
    %v393 = vld [vmem:[%s374 + $0x90] sm:$0xff]
    %v394 = vld [vmem:[%s374 + $0x98] sm:$0xff]
    %v395 = vld [vmem:[%s374 + $0xa0] sm:$0xff]
    %v396 = vld [vmem:[%s374 + $0xa8] sm:$0xff]
    %v397 = vld [vmem:[%s374 + $0xb0] sm:$0xff]
    %v398 = vld [vmem:[%s374 + $0xb8] sm:$0xff]
    %v399 = vld [vmem:[%s374 + $0xc0] sm:$0xff]
    %v400 = vld [vmem:[%s374 + $0xc8] sm:$0xff]
    %v401 = vld [vmem:[%s374 + $0xd0] sm:$0xff]
    %v402 = vld [vmem:[%s374 + $0xd8] sm:$0xff]
    %v403 = vld [vmem:[%s374 + $0xe0] sm:$0xff]
    %v404 = vld [vmem:[%s374 + $0xe8] sm:$0xff]
    %v405 = vld [vmem:[%s374 + $0xf0] sm:$0xff]
    %v406 = vld [vmem:[%s374 + $0xf8] sm:$0xff]
    %s407 = scalar_lea.vmem [#allocation5], 512
    %v408 = vld [vmem:[%s407] sm:$0xff]
    %v409 = vld [vmem:[%s407 + $0x8] sm:$0xff]
    %v410 = vld [vmem:[%s407 + $0x10] sm:$0xff]
    %v411 = vld [vmem:[%s407 + $0x18] sm:$0xff]
    %v412 = vld [vmem:[%s407 + $0x20] sm:$0xff]
    %v413 = vld [vmem:[%s407 + $0x28] sm:$0xff]
    %v414 = vld [vmem:[%s407 + $0x30] sm:$0xff]
    %v415 = vld [vmem:[%s407 + $0x38] sm:$0xff]
    %v416 = vld [vmem:[%s407 + $0x40] sm:$0xff]
    %v417 = vld [vmem:[%s407 + $0x48] sm:$0xff]
    %v418 = vld [vmem:[%s407 + $0x50] sm:$0xff]
    %v419 = vld [vmem:[%s407 + $0x58] sm:$0xff]
    %v420 = vld [vmem:[%s407 + $0x60] sm:$0xff]
    %v421 = vld [vmem:[%s407 + $0x68] sm:$0xff]
    %v422 = vld [vmem:[%s407 + $0x70] sm:$0xff]
    %v423 = vld [vmem:[%s407 + $0x78] sm:$0xff]
    %v424 = vld [vmem:[%s407 + $0x80] sm:$0xff]
    %v425 = vld [vmem:[%s407 + $0x88] sm:$0xff]
    %v426 = vld [vmem:[%s407 + $0x90] sm:$0xff]
    %v427 = vld [vmem:[%s407 + $0x98] sm:$0xff]
    %v428 = vld [vmem:[%s407 + $0xa0] sm:$0xff]
    %v429 = vld [vmem:[%s407 + $0xa8] sm:$0xff]
    %v430 = vld [vmem:[%s407 + $0xb0] sm:$0xff]
    %v431 = vld [vmem:[%s407 + $0xb8] sm:$0xff]
    %v432 = vld [vmem:[%s407 + $0xc0] sm:$0xff]
    %v433 = vld [vmem:[%s407 + $0xc8] sm:$0xff]
    %v434 = vld [vmem:[%s407 + $0xd0] sm:$0xff]
    %v435 = vld [vmem:[%s407 + $0xd8] sm:$0xff]
    %v436 = vld [vmem:[%s407 + $0xe0] sm:$0xff]
    %v437 = vld [vmem:[%s407 + $0xe8] sm:$0xff]
    %v438 = vld [vmem:[%s407 + $0xf0] sm:$0xff]
    %v439 = vld [vmem:[%s407 + $0xf8] sm:$0xff]
    %v472 = vunpack.c.l.b16 %v408
    %v473 = vunpack.c.h.b16 %v408
    %v474 = vunpack.c.l.b16 %v409
    %v475 = vunpack.c.h.b16 %v409
    %v476 = vunpack.c.l.b16 %v410
    %v477 = vunpack.c.h.b16 %v410
    %v478 = vunpack.c.l.b16 %v411
    %v479 = vunpack.c.h.b16 %v411
    %v480 = vunpack.c.l.b16 %v412
    %v481 = vunpack.c.h.b16 %v412
    %v482 = vunpack.c.l.b16 %v413
    %v483 = vunpack.c.h.b16 %v413
    %v484 = vunpack.c.l.b16 %v414
    %v485 = vunpack.c.h.b16 %v414
    %v486 = vunpack.c.l.b16 %v415
    %v487 = vunpack.c.h.b16 %v415
    %v488 = vunpack.c.l.b16 %v416
    %v489 = vunpack.c.h.b16 %v416
    %v490 = vunpack.c.l.b16 %v417
    %v491 = vunpack.c.h.b16 %v417
    %v492 = vunpack.c.l.b16 %v418
    %v493 = vunpack.c.h.b16 %v418
    %v494 = vunpack.c.l.b16 %v419
    %v495 = vunpack.c.h.b16 %v419
    %v496 = vunpack.c.l.b16 %v420
    %v497 = vunpack.c.h.b16 %v420
    %v498 = vunpack.c.l.b16 %v421
    %v499 = vunpack.c.h.b16 %v421
    %v500 = vunpack.c.l.b16 %v422
    %v501 = vunpack.c.h.b16 %v422
    %v502 = vunpack.c.l.b16 %v423
    %v503 = vunpack.c.h.b16 %v423
    %v504 = vunpack.c.l.b16 %v424
    %v505 = vunpack.c.h.b16 %v424
    %v506 = vunpack.c.l.b16 %v425
    %v507 = vunpack.c.h.b16 %v425
    %v508 = vunpack.c.l.b16 %v426
    %v509 = vunpack.c.h.b16 %v426
    %v510 = vunpack.c.l.b16 %v427
    %v511 = vunpack.c.h.b16 %v427
    %v512 = vunpack.c.l.b16 %v428
    %v513 = vunpack.c.h.b16 %v428
    %v514 = vunpack.c.l.b16 %v429
    %v515 = vunpack.c.h.b16 %v429
    %v516 = vunpack.c.l.b16 %v430
    %v517 = vunpack.c.h.b16 %v430
    %v518 = vunpack.c.l.b16 %v431
    %v519 = vunpack.c.h.b16 %v431
    %v520 = vunpack.c.l.b16 %v432
    %v521 = vunpack.c.h.b16 %v432
    %v522 = vunpack.c.l.b16 %v433
    %v523 = vunpack.c.h.b16 %v433
    %v524 = vunpack.c.l.b16 %v434
    %v525 = vunpack.c.h.b16 %v434
    %v526 = vunpack.c.l.b16 %v435
    %v527 = vunpack.c.h.b16 %v435
    %v528 = vunpack.c.l.b16 %v436
    %v529 = vunpack.c.h.b16 %v436
    %v530 = vunpack.c.l.b16 %v437
    %v531 = vunpack.c.h.b16 %v437
    %v532 = vunpack.c.l.b16 %v438
    %v533 = vunpack.c.h.b16 %v438
    %v534 = vunpack.c.l.b16 %v439
    %v535 = vunpack.c.h.b16 %v439
    %v536 = vpack.c.b16 %v474, %v472
    %v537 = vpack.c.b16 %v475, %v473
    %v538 = vpack.c.b16 %v478, %v476
    %v539 = vpack.c.b16 %v479, %v477
    %v540 = vpack.c.b16 %v482, %v480
    %v541 = vpack.c.b16 %v483, %v481
    %v542 = vpack.c.b16 %v486, %v484
    %v543 = vpack.c.b16 %v487, %v485
    %v544 = vpack.c.b16 %v490, %v488
    %v545 = vpack.c.b16 %v491, %v489
    %v546 = vpack.c.b16 %v494, %v492
    %v547 = vpack.c.b16 %v495, %v493
    %v548 = vpack.c.b16 %v498, %v496
    %v549 = vpack.c.b16 %v499, %v497
    %v550 = vpack.c.b16 %v502, %v500
    %v551 = vpack.c.b16 %v503, %v501
    %v552 = vpack.c.b16 %v506, %v504
    %v553 = vpack.c.b16 %v507, %v505
    %v554 = vpack.c.b16 %v510, %v508
    %v555 = vpack.c.b16 %v511, %v509
    %v556 = vpack.c.b16 %v514, %v512
    %v557 = vpack.c.b16 %v515, %v513
    %v558 = vpack.c.b16 %v518, %v516
    %v559 = vpack.c.b16 %v519, %v517
    %v560 = vpack.c.b16 %v522, %v520
    %v561 = vpack.c.b16 %v523, %v521
    %v562 = vpack.c.b16 %v526, %v524
    %v563 = vpack.c.b16 %v527, %v525
    %v564 = vpack.c.b16 %v530, %v528
    %v565 = vpack.c.b16 %v531, %v529
    %v566 = vpack.c.b16 %v534, %v532
    %v567 = vpack.c.b16 %v535, %v533
    %600 = vmatpush.bf16.msra.mxu0 %v550
    %601 = vmatpush.bf16.msra.mxu0 %v548
    %602 = vmatpush.bf16.msra.mxu0 %v546
    %603 = vmatpush.bf16.msra.mxu0 %v544
    %604 = vmatpush.bf16.msra.mxu0 %v542
    %605 = vmatpush.bf16.msra.mxu0 %v540
    %606 = vmatpush.bf16.msra.mxu0 %v538
    %607 = vmatpush.bf16.msra.mxu0 %v536
    %608 = vmatmul.bf16.gmra.mxu0 %v130
    %v609 = vpop.f32.mrf.mxu0
    %v610 = vadd.f32 0.0, %v609
    %v611 = vpop.f32.mrf.mxu0
    %v612 = vadd.f32 0.0, %v611
    %613 = vmatmul.bf16.gmra.mxu0 %v132
    %v614 = vpop.f32.mrf.mxu0
    %v615 = vadd.f32 0.0, %v614
    %v616 = vpop.f32.mrf.mxu0
    %v617 = vadd.f32 0.0, %v616
    %618 = vdwg.mxu0
    %619 = vmatpush.bf16.msra.mxu0 %v566
    %620 = vmatpush.bf16.msra.mxu0 %v564
    %621 = vmatpush.bf16.msra.mxu0 %v562
    %622 = vmatpush.bf16.msra.mxu0 %v560
    %623 = vmatpush.bf16.msra.mxu0 %v558
    %624 = vmatpush.bf16.msra.mxu0 %v556
    %625 = vmatpush.bf16.msra.mxu0 %v554
    %626 = vmatpush.bf16.msra.mxu0 %v552
    %627 = vmatmul.bf16.gmra.mxu0 %v131
    %v628 = vpop.f32.mrf.mxu0
    %v629 = vadd.f32 %v610, %v628
    %v630 = vpop.f32.mrf.mxu0
    %v631 = vadd.f32 %v612, %v630
    %632 = vmatmul.bf16.gmra.mxu0 %v133
    %v633 = vpop.f32.mrf.mxu0
    %v634 = vadd.f32 %v615, %v633
    %v635 = vpop.f32.mrf.mxu0
    %v636 = vadd.f32 %v617, %v635
    %637 = vdwg.mxu0
    %638 = vmatpush.bf16.msra.mxu0 %v551
    %639 = vmatpush.bf16.msra.mxu0 %v549
    %640 = vmatpush.bf16.msra.mxu0 %v547
    %641 = vmatpush.bf16.msra.mxu0 %v545
    %642 = vmatpush.bf16.msra.mxu0 %v543
    %643 = vmatpush.bf16.msra.mxu0 %v541
    %644 = vmatpush.bf16.msra.mxu0 %v539
    %645 = vmatpush.bf16.msra.mxu0 %v537
    %646 = vmatmul.bf16.gmra.mxu0 %v130
    %v647 = vpop.f32.mrf.mxu0
    %v648 = vadd.f32 0.0, %v647
    %v649 = vpop.f32.mrf.mxu0
    %v650 = vadd.f32 0.0, %v649
    %651 = vmatmul.bf16.gmra.mxu0 %v132
    %v652 = vpop.f32.mrf.mxu0
    %v653 = vadd.f32 0.0, %v652
    %v654 = vpop.f32.mrf.mxu0
    %v655 = vadd.f32 0.0, %v654
    %656 = vdwg.mxu0
    %657 = vmatpush.bf16.msra.mxu0 %v567
    %658 = vmatpush.bf16.msra.mxu0 %v565
    %659 = vmatpush.bf16.msra.mxu0 %v563
    %660 = vmatpush.bf16.msra.mxu0 %v561
    %661 = vmatpush.bf16.msra.mxu0 %v559
    %662 = vmatpush.bf16.msra.mxu0 %v557
    %663 = vmatpush.bf16.msra.mxu0 %v555
    %664 = vmatpush.bf16.msra.mxu0 %v553
    %665 = vmatmul.bf16.gmra.mxu0 %v131
    %v666 = vpop.f32.mrf.mxu0
    %v667 = vadd.f32 %v648, %v666
    %v668 = vpop.f32.mrf.mxu0
    %v669 = vadd.f32 %v650, %v668
    %670 = vmatmul.bf16.gmra.mxu0 %v133
    %v671 = vpop.f32.mrf.mxu0
    %v672 = vadd.f32 %v653, %v671
    %v673 = vpop.f32.mrf.mxu0
    %v674 = vadd.f32 %v655, %v673
    %675 = vdwg.mxu0
    %vm680 = vcmask 1040384
    %v681 = vrot.slane %v327, 7
    %v682 = vrot.slane %v365, 7
    %v683 = vrot.slane %v329, 7
    %v684 = vsel %vm680, %v681, %v683
    %v685 = vrot.slane %v367, 7
    %v686 = vsel %vm680, %v682, %v685
    %v695 = vrot.slane %v332, 7
    %v696 = vrot.slane %v370, 7
    %v697 = vrot.slane %v334, 7
    %v698 = vsel %vm680, %v695, %v697
    %v699 = vrot.slane %v372, 7
    %v700 = vsel %vm680, %v696, %v699
    %v705 = vsel %vm680, 0.0, %v681
    %v706 = vsel %vm680, 0.0, %v682
    %v707 = vsel %vm680, 0.0, %v695
    %v708 = vsel %vm680, 0.0, %v696
    %v741 = vunpack.c.l.b16 %v375
    %v742 = vunpack.c.h.b16 %v375
    %v743 = vunpack.c.l.b16 %v376
    %v744 = vunpack.c.h.b16 %v376
    %v745 = vunpack.c.l.b16 %v377
    %v746 = vunpack.c.h.b16 %v377
    %v747 = vunpack.c.l.b16 %v378
    %v748 = vunpack.c.h.b16 %v378
    %v749 = vunpack.c.l.b16 %v379
    %v750 = vunpack.c.h.b16 %v379
    %v751 = vunpack.c.l.b16 %v380
    %v752 = vunpack.c.h.b16 %v380
    %v753 = vunpack.c.l.b16 %v381
    %v754 = vunpack.c.h.b16 %v381
    %v755 = vunpack.c.l.b16 %v382
    %v756 = vunpack.c.h.b16 %v382
    %v757 = vunpack.c.l.b16 %v383
    %v758 = vunpack.c.h.b16 %v383
    %v759 = vunpack.c.l.b16 %v384
    %v760 = vunpack.c.h.b16 %v384
    %v761 = vunpack.c.l.b16 %v385
    %v762 = vunpack.c.h.b16 %v385
    %v763 = vunpack.c.l.b16 %v386
    %v764 = vunpack.c.h.b16 %v386
    %v765 = vunpack.c.l.b16 %v387
    %v766 = vunpack.c.h.b16 %v387
    %v767 = vunpack.c.l.b16 %v388
    %v768 = vunpack.c.h.b16 %v388
    %v769 = vunpack.c.l.b16 %v389
    %v770 = vunpack.c.h.b16 %v389
    %v771 = vunpack.c.l.b16 %v390
    %v772 = vunpack.c.h.b16 %v390
    %v773 = vunpack.c.l.b16 %v391
    %v774 = vunpack.c.h.b16 %v391
    %v775 = vunpack.c.l.b16 %v392
    %v776 = vunpack.c.h.b16 %v392
    %v777 = vunpack.c.l.b16 %v393
    %v778 = vunpack.c.h.b16 %v393
    %v779 = vunpack.c.l.b16 %v394
    %v780 = vunpack.c.h.b16 %v394
    %v781 = vunpack.c.l.b16 %v395
    %v782 = vunpack.c.h.b16 %v395
    %v783 = vunpack.c.l.b16 %v396
    %v784 = vunpack.c.h.b16 %v396
    %v785 = vunpack.c.l.b16 %v397
    %v786 = vunpack.c.h.b16 %v397
    %v787 = vunpack.c.l.b16 %v398
    %v788 = vunpack.c.h.b16 %v398
    %v789 = vunpack.c.l.b16 %v399
    %v790 = vunpack.c.h.b16 %v399
    %v791 = vunpack.c.l.b16 %v400
    %v792 = vunpack.c.h.b16 %v400
    %v793 = vunpack.c.l.b16 %v401
    %v794 = vunpack.c.h.b16 %v401
    %v795 = vunpack.c.l.b16 %v402
    %v796 = vunpack.c.h.b16 %v402
    %v797 = vunpack.c.l.b16 %v403
    %v798 = vunpack.c.h.b16 %v403
    %v799 = vunpack.c.l.b16 %v404
    %v800 = vunpack.c.h.b16 %v404
    %v801 = vunpack.c.l.b16 %v405
    %v802 = vunpack.c.h.b16 %v405
    %v803 = vunpack.c.l.b16 %v406
    %v804 = vunpack.c.h.b16 %v406
    %v805 = vpack.c.b16 %v743, %v741
    %v806 = vpack.c.b16 %v744, %v742
    %v807 = vpack.c.b16 %v747, %v745
    %v808 = vpack.c.b16 %v748, %v746
    %v809 = vpack.c.b16 %v751, %v749
    %v810 = vpack.c.b16 %v752, %v750
    %v811 = vpack.c.b16 %v755, %v753
    %v812 = vpack.c.b16 %v756, %v754
    %v813 = vpack.c.b16 %v759, %v757
    %v814 = vpack.c.b16 %v760, %v758
    %v815 = vpack.c.b16 %v763, %v761
    %v816 = vpack.c.b16 %v764, %v762
    %v817 = vpack.c.b16 %v767, %v765
    %v818 = vpack.c.b16 %v768, %v766
    %v819 = vpack.c.b16 %v771, %v769
    %v820 = vpack.c.b16 %v772, %v770
    %v821 = vpack.c.b16 %v775, %v773
    %v822 = vpack.c.b16 %v776, %v774
    %v823 = vpack.c.b16 %v779, %v777
    %v824 = vpack.c.b16 %v780, %v778
    %v825 = vpack.c.b16 %v783, %v781
    %v826 = vpack.c.b16 %v784, %v782
    %v827 = vpack.c.b16 %v787, %v785
    %v828 = vpack.c.b16 %v788, %v786
    %v829 = vpack.c.b16 %v791, %v789
    %v830 = vpack.c.b16 %v792, %v790
    %v831 = vpack.c.b16 %v795, %v793
    %v832 = vpack.c.b16 %v796, %v794
    %v833 = vpack.c.b16 %v799, %v797
    %v834 = vpack.c.b16 %v800, %v798
    %v835 = vpack.c.b16 %v803, %v801
    %v836 = vpack.c.b16 %v804, %v802
    %869 = vmatpush.bf16.msra.mxu0 %v819
    %870 = vmatpush.bf16.msra.mxu0 %v817
    %871 = vmatpush.bf16.msra.mxu0 %v815
    %872 = vmatpush.bf16.msra.mxu0 %v813
    %873 = vmatpush.bf16.msra.mxu0 %v811
    %874 = vmatpush.bf16.msra.mxu0 %v809
    %875 = vmatpush.bf16.msra.mxu0 %v807
    %876 = vmatpush.bf16.msra.mxu0 %v805
    %877 = vmatmul.bf16.gmra.mxu0 %v130
    %v878 = vpop.f32.mrf.mxu0
    %v879 = vadd.f32 %v705, %v878
    %v880 = vpop.f32.mrf.mxu0
    %v881 = vadd.f32 %v684, %v880
    %882 = vmatmul.bf16.gmra.mxu0 %v132
    %v883 = vpop.f32.mrf.mxu0
    %v884 = vadd.f32 %v707, %v883
    %v885 = vpop.f32.mrf.mxu0
    %v886 = vadd.f32 %v698, %v885
    %887 = vdwg.mxu0
    %888 = vmatpush.bf16.msra.mxu0 %v835
    %889 = vmatpush.bf16.msra.mxu0 %v833
    %890 = vmatpush.bf16.msra.mxu0 %v831
    %891 = vmatpush.bf16.msra.mxu0 %v829
    %892 = vmatpush.bf16.msra.mxu0 %v827
    %893 = vmatpush.bf16.msra.mxu0 %v825
    %894 = vmatpush.bf16.msra.mxu0 %v823
    %895 = vmatpush.bf16.msra.mxu0 %v821
    %896 = vmatmul.bf16.gmra.mxu0 %v131
    %v897 = vpop.f32.mrf.mxu0
    %v898 = vadd.f32 %v879, %v897
    %v899 = vpop.f32.mrf.mxu0
    %v900 = vadd.f32 %v881, %v899
    %901 = vmatmul.bf16.gmra.mxu0 %v133
    %v902 = vpop.f32.mrf.mxu0
    %v903 = vadd.f32 %v884, %v902
    %v904 = vpop.f32.mrf.mxu0
    %v905 = vadd.f32 %v886, %v904
    %906 = vdwg.mxu0
    %907 = vmatpush.bf16.msra.mxu0 %v820
    %908 = vmatpush.bf16.msra.mxu0 %v818
    %909 = vmatpush.bf16.msra.mxu0 %v816
    %910 = vmatpush.bf16.msra.mxu0 %v814
    %911 = vmatpush.bf16.msra.mxu0 %v812
    %912 = vmatpush.bf16.msra.mxu0 %v810
    %913 = vmatpush.bf16.msra.mxu0 %v808
    %914 = vmatpush.bf16.msra.mxu0 %v806
    %915 = vmatmul.bf16.gmra.mxu0 %v130
    %v916 = vpop.f32.mrf.mxu0
    %v917 = vadd.f32 %v706, %v916
    %v918 = vpop.f32.mrf.mxu0
    %v919 = vadd.f32 %v686, %v918
    %920 = vmatmul.bf16.gmra.mxu0 %v132
    %v921 = vpop.f32.mrf.mxu0
    %v922 = vadd.f32 %v708, %v921
    %v923 = vpop.f32.mrf.mxu0
    %v924 = vadd.f32 %v700, %v923
    %925 = vdwg.mxu0
    %926 = vmatpush.bf16.msra.mxu0 %v836
    %927 = vmatpush.bf16.msra.mxu0 %v834
    %928 = vmatpush.bf16.msra.mxu0 %v832
    %929 = vmatpush.bf16.msra.mxu0 %v830
    %930 = vmatpush.bf16.msra.mxu0 %v828
    %931 = vmatpush.bf16.msra.mxu0 %v826
    %932 = vmatpush.bf16.msra.mxu0 %v824
    %933 = vmatpush.bf16.msra.mxu0 %v822
    %934 = vmatmul.bf16.gmra.mxu0 %v131
    %v935 = vpop.f32.mrf.mxu0
    %v936 = vadd.f32 %v917, %v935
    %v937 = vpop.f32.mrf.mxu0
    %v938 = vadd.f32 %v919, %v937
    %939 = vmatmul.bf16.gmra.mxu0 %v133
    %v940 = vpop.f32.mrf.mxu0
    %v941 = vadd.f32 %v922, %v940
    %v942 = vpop.f32.mrf.mxu0
    %v943 = vadd.f32 %v924, %v942
    %944 = vdwg.mxu0
    %vm949 = vcmask 1046528
    %v950 = vrot.slane %v629, 1
    %v951 = vrot.slane %v631, 1
    %v952 = vsel %vm949, %v950, %v951
    %v953 = vrot.slane %v667, 1
    %v954 = vrot.slane %v669, 1
    %v955 = vsel %vm949, %v953, %v954
    %v964 = vrot.slane %v634, 1
    %v965 = vrot.slane %v636, 1
    %v966 = vsel %vm949, %v964, %v965
    %v967 = vrot.slane %v672, 1
    %v968 = vrot.slane %v674, 1
    %v969 = vsel %vm949, %v967, %v968
    %v974 = vsel %vm949, %v951, 0.0
    %v975 = vsel %vm949, %v954, 0.0
    %v976 = vsel %vm949, %v965, 0.0
    %v977 = vsel %vm949, %v968, 0.0
    %v978 = vadd.f32 %v898, %v952
    %v979 = vadd.f32 %v936, %v955
    %v980 = vadd.f32 %v900, %v974
    %v981 = vadd.f32 %v938, %v975
    %v982 = vadd.f32 %v903, %v966
    %v983 = vadd.f32 %v941, %v969
    %v984 = vadd.f32 %v905, %v976
    %v985 = vadd.f32 %v943, %v977
    %v986 = vld [vmem:[#allocation7] sm:$0x3]
    %v988 = vperm.slane %v986, 0
    %v989 = vperm.slane %v986, 1
    %v992 = vadd.f32 %v978, %v988
    %v993 = vadd.f32 %v979, %v989
    %v994 = vadd.f32 %v980, %v988
    %v995 = vadd.f32 %v981, %v989
    %v996 = vadd.f32 %v982, %v988
    %v997 = vadd.f32 %v983, %v989
    %v998 = vadd.f32 %v984, %v988
    %v999 = vadd.f32 %v985, %v989
    %v1000 = vmax.f32 %v992, 0.0
    %v1001 = vmax.f32 %v993, 0.0
    %v1002 = vmax.f32 %v994, 0.0
    %v1003 = vmax.f32 %v995, 0.0
    %v1004 = vmax.f32 %v996, 0.0
    %v1005 = vmax.f32 %v997, 0.0
    %v1006 = vmax.f32 %v998, 0.0
    %v1007 = vmax.f32 %v999, 0.0
    %v1008 = vpack.c.bf16 %v1002, %v1000
    %v1009 = vpack.c.bf16 %v1003, %v1001
    %v1010 = vpack.c.bf16 %v1006, %v1004
    %v1011 = vpack.c.bf16 %v1007, %v1005
    %v1012 = vld [vmem:[#allocation8] sm:$0xff]
    %v1013 = vld [vmem:[#allocation8 + $0x8] sm:$0xff]
    %v1014 = vld [vmem:[#allocation8 + $0x10] sm:$0xff]
    %v1015 = vld [vmem:[#allocation8 + $0x18] sm:$0xff]
    %v1016 = vld [vmem:[#allocation8 + $0x20] sm:$0xff]
    %v1017 = vld [vmem:[#allocation8 + $0x28] sm:$0xff]
    %v1018 = vld [vmem:[#allocation8 + $0x30] sm:$0xff]
    %v1019 = vld [vmem:[#allocation8 + $0x38] sm:$0xff]
    %v1020 = vld [vmem:[#allocation8 + $0x40] sm:$0xff]
    %v1021 = vld [vmem:[#allocation8 + $0x48] sm:$0xff]
    %v1022 = vld [vmem:[#allocation8 + $0x50] sm:$0xff]
    %v1023 = vld [vmem:[#allocation8 + $0x58] sm:$0xff]
    %v1024 = vld [vmem:[#allocation8 + $0x60] sm:$0xff]
    %v1025 = vld [vmem:[#allocation8 + $0x68] sm:$0xff]
    %v1026 = vld [vmem:[#allocation8 + $0x70] sm:$0xff]
    %v1027 = vld [vmem:[#allocation8 + $0x78] sm:$0xff]
    %v1028 = vld [vmem:[#allocation8 + $0x80] sm:$0xff]
    %v1029 = vld [vmem:[#allocation8 + $0x88] sm:$0xff]
    %v1030 = vld [vmem:[#allocation8 + $0x90] sm:$0xff]
    %v1031 = vld [vmem:[#allocation8 + $0x98] sm:$0xff]
    %v1032 = vld [vmem:[#allocation8 + $0xa0] sm:$0xff]
    %v1033 = vld [vmem:[#allocation8 + $0xa8] sm:$0xff]
    %v1034 = vld [vmem:[#allocation8 + $0xb0] sm:$0xff]
    %v1035 = vld [vmem:[#allocation8 + $0xb8] sm:$0xff]
    %v1036 = vld [vmem:[#allocation8 + $0xc0] sm:$0xff]
    %v1037 = vld [vmem:[#allocation8 + $0xc8] sm:$0xff]
    %v1038 = vld [vmem:[#allocation8 + $0xd0] sm:$0xff]
    %v1039 = vld [vmem:[#allocation8 + $0xd8] sm:$0xff]
    %v1040 = vld [vmem:[#allocation8 + $0xe0] sm:$0xff]
    %v1041 = vld [vmem:[#allocation8 + $0xe8] sm:$0xff]
    %v1042 = vld [vmem:[#allocation8 + $0xf0] sm:$0xff]
    %v1043 = vld [vmem:[#allocation8 + $0xf8] sm:$0xff]
    %v1076 = vunpack.c.l.b16 %v1012
    %v1077 = vunpack.c.h.b16 %v1012
    %v1078 = vunpack.c.l.b16 %v1013
    %v1079 = vunpack.c.h.b16 %v1013
    %v1080 = vunpack.c.l.b16 %v1014
    %v1081 = vunpack.c.h.b16 %v1014
    %v1082 = vunpack.c.l.b16 %v1015
    %v1083 = vunpack.c.h.b16 %v1015
    %v1084 = vunpack.c.l.b16 %v1016
    %v1085 = vunpack.c.h.b16 %v1016
    %v1086 = vunpack.c.l.b16 %v1017
    %v1087 = vunpack.c.h.b16 %v1017
    %v1088 = vunpack.c.l.b16 %v1018
    %v1089 = vunpack.c.h.b16 %v1018
    %v1090 = vunpack.c.l.b16 %v1019
    %v1091 = vunpack.c.h.b16 %v1019
    %v1092 = vunpack.c.l.b16 %v1020
    %v1093 = vunpack.c.h.b16 %v1020
    %v1094 = vunpack.c.l.b16 %v1021
    %v1095 = vunpack.c.h.b16 %v1021
    %v1096 = vunpack.c.l.b16 %v1022
    %v1097 = vunpack.c.h.b16 %v1022
    %v1098 = vunpack.c.l.b16 %v1023
    %v1099 = vunpack.c.h.b16 %v1023
    %v1100 = vunpack.c.l.b16 %v1024
    %v1101 = vunpack.c.h.b16 %v1024
    %v1102 = vunpack.c.l.b16 %v1025
    %v1103 = vunpack.c.h.b16 %v1025
    %v1104 = vunpack.c.l.b16 %v1026
    %v1105 = vunpack.c.h.b16 %v1026
    %v1106 = vunpack.c.l.b16 %v1027
    %v1107 = vunpack.c.h.b16 %v1027
    %v1108 = vunpack.c.l.b16 %v1028
    %v1109 = vunpack.c.h.b16 %v1028
    %v1110 = vunpack.c.l.b16 %v1029
    %v1111 = vunpack.c.h.b16 %v1029
    %v1112 = vunpack.c.l.b16 %v1030
    %v1113 = vunpack.c.h.b16 %v1030
    %v1114 = vunpack.c.l.b16 %v1031
    %v1115 = vunpack.c.h.b16 %v1031
    %v1116 = vunpack.c.l.b16 %v1032
    %v1117 = vunpack.c.h.b16 %v1032
    %v1118 = vunpack.c.l.b16 %v1033
    %v1119 = vunpack.c.h.b16 %v1033
    %v1120 = vunpack.c.l.b16 %v1034
    %v1121 = vunpack.c.h.b16 %v1034
    %v1122 = vunpack.c.l.b16 %v1035
    %v1123 = vunpack.c.h.b16 %v1035
    %v1124 = vunpack.c.l.b16 %v1036
    %v1125 = vunpack.c.h.b16 %v1036
    %v1126 = vunpack.c.l.b16 %v1037
    %v1127 = vunpack.c.h.b16 %v1037
    %v1128 = vunpack.c.l.b16 %v1038
    %v1129 = vunpack.c.h.b16 %v1038
    %v1130 = vunpack.c.l.b16 %v1039
    %v1131 = vunpack.c.h.b16 %v1039
    %v1132 = vunpack.c.l.b16 %v1040
    %v1133 = vunpack.c.h.b16 %v1040
    %v1134 = vunpack.c.l.b16 %v1041
    %v1135 = vunpack.c.h.b16 %v1041
    %v1136 = vunpack.c.l.b16 %v1042
    %v1137 = vunpack.c.h.b16 %v1042
    %v1138 = vunpack.c.l.b16 %v1043
    %v1139 = vunpack.c.h.b16 %v1043
    %v1140 = vpack.c.b16 %v1078, %v1076
    %v1141 = vpack.c.b16 %v1079, %v1077
    %v1142 = vpack.c.b16 %v1082, %v1080
    %v1143 = vpack.c.b16 %v1083, %v1081
    %v1144 = vpack.c.b16 %v1086, %v1084
    %v1145 = vpack.c.b16 %v1087, %v1085
    %v1146 = vpack.c.b16 %v1090, %v1088
    %v1147 = vpack.c.b16 %v1091, %v1089
    %v1148 = vpack.c.b16 %v1094, %v1092
    %v1149 = vpack.c.b16 %v1095, %v1093
    %v1150 = vpack.c.b16 %v1098, %v1096
    %v1151 = vpack.c.b16 %v1099, %v1097
    %v1152 = vpack.c.b16 %v1102, %v1100
    %v1153 = vpack.c.b16 %v1103, %v1101
    %v1154 = vpack.c.b16 %v1106, %v1104
    %v1155 = vpack.c.b16 %v1107, %v1105
    %v1156 = vpack.c.b16 %v1110, %v1108
    %v1157 = vpack.c.b16 %v1111, %v1109
    %v1158 = vpack.c.b16 %v1114, %v1112
    %v1159 = vpack.c.b16 %v1115, %v1113
    %v1160 = vpack.c.b16 %v1118, %v1116
    %v1161 = vpack.c.b16 %v1119, %v1117
    %v1162 = vpack.c.b16 %v1122, %v1120
    %v1163 = vpack.c.b16 %v1123, %v1121
    %v1164 = vpack.c.b16 %v1126, %v1124
    %v1165 = vpack.c.b16 %v1127, %v1125
    %v1166 = vpack.c.b16 %v1130, %v1128
    %v1167 = vpack.c.b16 %v1131, %v1129
    %v1168 = vpack.c.b16 %v1134, %v1132
    %v1169 = vpack.c.b16 %v1135, %v1133
    %v1170 = vpack.c.b16 %v1138, %v1136
    %v1171 = vpack.c.b16 %v1139, %v1137
    %1204 = vmatpush.bf16.msra.mxu0 %v1154
    %1205 = vmatpush.bf16.msra.mxu0 %v1152
    %1206 = vmatpush.bf16.msra.mxu0 %v1150
    %1207 = vmatpush.bf16.msra.mxu0 %v1148
    %1208 = vmatpush.bf16.msra.mxu0 %v1146
    %1209 = vmatpush.bf16.msra.mxu0 %v1144
    %1210 = vmatpush.bf16.msra.mxu0 %v1142
    %1211 = vmatpush.bf16.msra.mxu0 %v1140
    %1212 = vmatmul.bf16.gmra.mxu0 %v1008
    %v1213 = vpop.f32.mrf.mxu0
    %v1214 = vadd.f32 0.0, %v1213
    %v1215 = vpop.f32.mrf.mxu0
    %v1216 = vadd.f32 0.0, %v1215
    %1217 = vmatmul.bf16.gmra.mxu0 %v1010
    %v1218 = vpop.f32.mrf.mxu0
    %v1219 = vadd.f32 0.0, %v1218
    %v1220 = vpop.f32.mrf.mxu0
    %v1221 = vadd.f32 0.0, %v1220
    %1222 = vdwg.mxu0
    %1223 = vmatpush.bf16.msra.mxu0 %v1170
    %1224 = vmatpush.bf16.msra.mxu0 %v1168
    %1225 = vmatpush.bf16.msra.mxu0 %v1166
    %1226 = vmatpush.bf16.msra.mxu0 %v1164
    %1227 = vmatpush.bf16.msra.mxu0 %v1162
    %1228 = vmatpush.bf16.msra.mxu0 %v1160
    %1229 = vmatpush.bf16.msra.mxu0 %v1158
    %1230 = vmatpush.bf16.msra.mxu0 %v1156
    %1231 = vmatmul.bf16.gmra.mxu0 %v1009
    %v1232 = vpop.f32.mrf.mxu0
    %v1233 = vadd.f32 %v1214, %v1232
    %v1234 = vpop.f32.mrf.mxu0
    %v1235 = vadd.f32 %v1216, %v1234
    %1236 = vmatmul.bf16.gmra.mxu0 %v1011
    %v1237 = vpop.f32.mrf.mxu0
    %v1238 = vadd.f32 %v1219, %v1237
    %v1239 = vpop.f32.mrf.mxu0
    %v1240 = vadd.f32 %v1221, %v1239
    %1241 = vdwg.mxu0
    %1242 = vmatpush.bf16.msra.mxu0 %v1155
    %1243 = vmatpush.bf16.msra.mxu0 %v1153
    %1244 = vmatpush.bf16.msra.mxu0 %v1151
    %1245 = vmatpush.bf16.msra.mxu0 %v1149
    %1246 = vmatpush.bf16.msra.mxu0 %v1147
    %1247 = vmatpush.bf16.msra.mxu0 %v1145
    %1248 = vmatpush.bf16.msra.mxu0 %v1143
    %1249 = vmatpush.bf16.msra.mxu0 %v1141
    %1250 = vmatmul.bf16.gmra.mxu0 %v1008
    %v1251 = vpop.f32.mrf.mxu0
    %v1252 = vadd.f32 0.0, %v1251
    %v1253 = vpop.f32.mrf.mxu0
    %v1254 = vadd.f32 0.0, %v1253
    %1255 = vmatmul.bf16.gmra.mxu0 %v1010
    %v1256 = vpop.f32.mrf.mxu0
    %v1257 = vadd.f32 0.0, %v1256
    %v1258 = vpop.f32.mrf.mxu0
    %v1259 = vadd.f32 0.0, %v1258
    %1260 = vdwg.mxu0
    %1261 = vmatpush.bf16.msra.mxu0 %v1171
    %1262 = vmatpush.bf16.msra.mxu0 %v1169
    %1263 = vmatpush.bf16.msra.mxu0 %v1167
    %1264 = vmatpush.bf16.msra.mxu0 %v1165
    %1265 = vmatpush.bf16.msra.mxu0 %v1163
    %1266 = vmatpush.bf16.msra.mxu0 %v1161
    %1267 = vmatpush.bf16.msra.mxu0 %v1159
    %1268 = vmatpush.bf16.msra.mxu0 %v1157
    %1269 = vmatmul.bf16.gmra.mxu0 %v1009
    %v1270 = vpop.f32.mrf.mxu0
    %v1271 = vadd.f32 %v1252, %v1270
    %v1272 = vpop.f32.mrf.mxu0
    %v1273 = vadd.f32 %v1254, %v1272
    %1274 = vmatmul.bf16.gmra.mxu0 %v1011
    %v1275 = vpop.f32.mrf.mxu0
    %v1276 = vadd.f32 %v1257, %v1275
    %v1277 = vpop.f32.mrf.mxu0
    %v1278 = vadd.f32 %v1259, %v1277
    %1279 = vdwg.mxu0
    %s1280 = scalar_lea.vmem [#allocation8], 256
    %v1281 = vld [vmem:[%s1280] sm:$0xff]
    %v1282 = vld [vmem:[%s1280 + $0x8] sm:$0xff]
    %v1283 = vld [vmem:[%s1280 + $0x10] sm:$0xff]
    %v1284 = vld [vmem:[%s1280 + $0x18] sm:$0xff]
    %v1285 = vld [vmem:[%s1280 + $0x20] sm:$0xff]
    %v1286 = vld [vmem:[%s1280 + $0x28] sm:$0xff]
    %v1287 = vld [vmem:[%s1280 + $0x30] sm:$0xff]
    %v1288 = vld [vmem:[%s1280 + $0x38] sm:$0xff]
    %v1289 = vld [vmem:[%s1280 + $0x40] sm:$0xff]
    %v1290 = vld [vmem:[%s1280 + $0x48] sm:$0xff]
    %v1291 = vld [vmem:[%s1280 + $0x50] sm:$0xff]
    %v1292 = vld [vmem:[%s1280 + $0x58] sm:$0xff]
    %v1293 = vld [vmem:[%s1280 + $0x60] sm:$0xff]
    %v1294 = vld [vmem:[%s1280 + $0x68] sm:$0xff]
    %v1295 = vld [vmem:[%s1280 + $0x70] sm:$0xff]
    %v1296 = vld [vmem:[%s1280 + $0x78] sm:$0xff]
    %v1297 = vld [vmem:[%s1280 + $0x80] sm:$0xff]
    %v1298 = vld [vmem:[%s1280 + $0x88] sm:$0xff]
    %v1299 = vld [vmem:[%s1280 + $0x90] sm:$0xff]
    %v1300 = vld [vmem:[%s1280 + $0x98] sm:$0xff]
    %v1301 = vld [vmem:[%s1280 + $0xa0] sm:$0xff]
    %v1302 = vld [vmem:[%s1280 + $0xa8] sm:$0xff]
    %v1303 = vld [vmem:[%s1280 + $0xb0] sm:$0xff]
    %v1304 = vld [vmem:[%s1280 + $0xb8] sm:$0xff]
    %v1305 = vld [vmem:[%s1280 + $0xc0] sm:$0xff]
    %v1306 = vld [vmem:[%s1280 + $0xc8] sm:$0xff]
    %v1307 = vld [vmem:[%s1280 + $0xd0] sm:$0xff]
    %v1308 = vld [vmem:[%s1280 + $0xd8] sm:$0xff]
    %v1309 = vld [vmem:[%s1280 + $0xe0] sm:$0xff]
    %v1310 = vld [vmem:[%s1280 + $0xe8] sm:$0xff]
    %v1311 = vld [vmem:[%s1280 + $0xf0] sm:$0xff]
    %v1312 = vld [vmem:[%s1280 + $0xf8] sm:$0xff]
    %s1313 = scalar_lea.vmem [#allocation8], 512
    %v1314 = vld [vmem:[%s1313] sm:$0xff]
    %v1315 = vld [vmem:[%s1313 + $0x8] sm:$0xff]
    %v1316 = vld [vmem:[%s1313 + $0x10] sm:$0xff]
    %v1317 = vld [vmem:[%s1313 + $0x18] sm:$0xff]
    %v1318 = vld [vmem:[%s1313 + $0x20] sm:$0xff]
    %v1319 = vld [vmem:[%s1313 + $0x28] sm:$0xff]
    %v1320 = vld [vmem:[%s1313 + $0x30] sm:$0xff]
    %v1321 = vld [vmem:[%s1313 + $0x38] sm:$0xff]
    %v1322 = vld [vmem:[%s1313 + $0x40] sm:$0xff]
    %v1323 = vld [vmem:[%s1313 + $0x48] sm:$0xff]
    %v1324 = vld [vmem:[%s1313 + $0x50] sm:$0xff]
    %v1325 = vld [vmem:[%s1313 + $0x58] sm:$0xff]
    %v1326 = vld [vmem:[%s1313 + $0x60] sm:$0xff]
    %v1327 = vld [vmem:[%s1313 + $0x68] sm:$0xff]
    %v1328 = vld [vmem:[%s1313 + $0x70] sm:$0xff]
    %v1329 = vld [vmem:[%s1313 + $0x78] sm:$0xff]
    %v1330 = vld [vmem:[%s1313 + $0x80] sm:$0xff]
    %v1331 = vld [vmem:[%s1313 + $0x88] sm:$0xff]
    %v1332 = vld [vmem:[%s1313 + $0x90] sm:$0xff]
    %v1333 = vld [vmem:[%s1313 + $0x98] sm:$0xff]
    %v1334 = vld [vmem:[%s1313 + $0xa0] sm:$0xff]
    %v1335 = vld [vmem:[%s1313 + $0xa8] sm:$0xff]
    %v1336 = vld [vmem:[%s1313 + $0xb0] sm:$0xff]
    %v1337 = vld [vmem:[%s1313 + $0xb8] sm:$0xff]
    %v1338 = vld [vmem:[%s1313 + $0xc0] sm:$0xff]
    %v1339 = vld [vmem:[%s1313 + $0xc8] sm:$0xff]
    %v1340 = vld [vmem:[%s1313 + $0xd0] sm:$0xff]
    %v1341 = vld [vmem:[%s1313 + $0xd8] sm:$0xff]
    %v1342 = vld [vmem:[%s1313 + $0xe0] sm:$0xff]
    %v1343 = vld [vmem:[%s1313 + $0xe8] sm:$0xff]
    %v1344 = vld [vmem:[%s1313 + $0xf0] sm:$0xff]
    %v1345 = vld [vmem:[%s1313 + $0xf8] sm:$0xff]
    %v1378 = vunpack.c.l.b16 %v1314
    %v1379 = vunpack.c.h.b16 %v1314
    %v1380 = vunpack.c.l.b16 %v1315
    %v1381 = vunpack.c.h.b16 %v1315
    %v1382 = vunpack.c.l.b16 %v1316
    %v1383 = vunpack.c.h.b16 %v1316
    %v1384 = vunpack.c.l.b16 %v1317
    %v1385 = vunpack.c.h.b16 %v1317
    %v1386 = vunpack.c.l.b16 %v1318
    %v1387 = vunpack.c.h.b16 %v1318
    %v1388 = vunpack.c.l.b16 %v1319
    %v1389 = vunpack.c.h.b16 %v1319
    %v1390 = vunpack.c.l.b16 %v1320
    %v1391 = vunpack.c.h.b16 %v1320
    %v1392 = vunpack.c.l.b16 %v1321
    %v1393 = vunpack.c.h.b16 %v1321
    %v1394 = vunpack.c.l.b16 %v1322
    %v1395 = vunpack.c.h.b16 %v1322
    %v1396 = vunpack.c.l.b16 %v1323
    %v1397 = vunpack.c.h.b16 %v1323
    %v1398 = vunpack.c.l.b16 %v1324
    %v1399 = vunpack.c.h.b16 %v1324
    %v1400 = vunpack.c.l.b16 %v1325
    %v1401 = vunpack.c.h.b16 %v1325
    %v1402 = vunpack.c.l.b16 %v1326
    %v1403 = vunpack.c.h.b16 %v1326
    %v1404 = vunpack.c.l.b16 %v1327
    %v1405 = vunpack.c.h.b16 %v1327
    %v1406 = vunpack.c.l.b16 %v1328
    %v1407 = vunpack.c.h.b16 %v1328
    %v1408 = vunpack.c.l.b16 %v1329
    %v1409 = vunpack.c.h.b16 %v1329
    %v1410 = vunpack.c.l.b16 %v1330
    %v1411 = vunpack.c.h.b16 %v1330
    %v1412 = vunpack.c.l.b16 %v1331
    %v1413 = vunpack.c.h.b16 %v1331
    %v1414 = vunpack.c.l.b16 %v1332
    %v1415 = vunpack.c.h.b16 %v1332
    %v1416 = vunpack.c.l.b16 %v1333
    %v1417 = vunpack.c.h.b16 %v1333
    %v1418 = vunpack.c.l.b16 %v1334
    %v1419 = vunpack.c.h.b16 %v1334
    %v1420 = vunpack.c.l.b16 %v1335
    %v1421 = vunpack.c.h.b16 %v1335
    %v1422 = vunpack.c.l.b16 %v1336
    %v1423 = vunpack.c.h.b16 %v1336
    %v1424 = vunpack.c.l.b16 %v1337
    %v1425 = vunpack.c.h.b16 %v1337
    %v1426 = vunpack.c.l.b16 %v1338
    %v1427 = vunpack.c.h.b16 %v1338
    %v1428 = vunpack.c.l.b16 %v1339
    %v1429 = vunpack.c.h.b16 %v1339
    %v1430 = vunpack.c.l.b16 %v1340
    %v1431 = vunpack.c.h.b16 %v1340
    %v1432 = vunpack.c.l.b16 %v1341
    %v1433 = vunpack.c.h.b16 %v1341
    %v1434 = vunpack.c.l.b16 %v1342
    %v1435 = vunpack.c.h.b16 %v1342
    %v1436 = vunpack.c.l.b16 %v1343
    %v1437 = vunpack.c.h.b16 %v1343
    %v1438 = vunpack.c.l.b16 %v1344
    %v1439 = vunpack.c.h.b16 %v1344
    %v1440 = vunpack.c.l.b16 %v1345
    %v1441 = vunpack.c.h.b16 %v1345
    %v1442 = vpack.c.b16 %v1380, %v1378
    %v1443 = vpack.c.b16 %v1381, %v1379
    %v1444 = vpack.c.b16 %v1384, %v1382
    %v1445 = vpack.c.b16 %v1385, %v1383
    %v1446 = vpack.c.b16 %v1388, %v1386
    %v1447 = vpack.c.b16 %v1389, %v1387
    %v1448 = vpack.c.b16 %v1392, %v1390
    %v1449 = vpack.c.b16 %v1393, %v1391
    %v1450 = vpack.c.b16 %v1396, %v1394
    %v1451 = vpack.c.b16 %v1397, %v1395
    %v1452 = vpack.c.b16 %v1400, %v1398
    %v1453 = vpack.c.b16 %v1401, %v1399
    %v1454 = vpack.c.b16 %v1404, %v1402
    %v1455 = vpack.c.b16 %v1405, %v1403
    %v1456 = vpack.c.b16 %v1408, %v1406
    %v1457 = vpack.c.b16 %v1409, %v1407
    %v1458 = vpack.c.b16 %v1412, %v1410
    %v1459 = vpack.c.b16 %v1413, %v1411
    %v1460 = vpack.c.b16 %v1416, %v1414
    %v1461 = vpack.c.b16 %v1417, %v1415
    %v1462 = vpack.c.b16 %v1420, %v1418
    %v1463 = vpack.c.b16 %v1421, %v1419
    %v1464 = vpack.c.b16 %v1424, %v1422
    %v1465 = vpack.c.b16 %v1425, %v1423
    %v1466 = vpack.c.b16 %v1428, %v1426
    %v1467 = vpack.c.b16 %v1429, %v1427
    %v1468 = vpack.c.b16 %v1432, %v1430
    %v1469 = vpack.c.b16 %v1433, %v1431
    %v1470 = vpack.c.b16 %v1436, %v1434
    %v1471 = vpack.c.b16 %v1437, %v1435
    %v1472 = vpack.c.b16 %v1440, %v1438
    %v1473 = vpack.c.b16 %v1441, %v1439
    %1506 = vmatpush.bf16.msra.mxu0 %v1456
    %1507 = vmatpush.bf16.msra.mxu0 %v1454
    %1508 = vmatpush.bf16.msra.mxu0 %v1452
    %1509 = vmatpush.bf16.msra.mxu0 %v1450
    %1510 = vmatpush.bf16.msra.mxu0 %v1448
    %1511 = vmatpush.bf16.msra.mxu0 %v1446
    %1512 = vmatpush.bf16.msra.mxu0 %v1444
    %1513 = vmatpush.bf16.msra.mxu0 %v1442
    %1514 = vmatmul.bf16.gmra.mxu0 %v1008
    %v1515 = vpop.f32.mrf.mxu0
    %v1516 = vadd.f32 0.0, %v1515
    %v1517 = vpop.f32.mrf.mxu0
    %v1518 = vadd.f32 0.0, %v1517
    %1519 = vmatmul.bf16.gmra.mxu0 %v1010
    %v1520 = vpop.f32.mrf.mxu0
    %v1521 = vadd.f32 0.0, %v1520
    %v1522 = vpop.f32.mrf.mxu0
    %v1523 = vadd.f32 0.0, %v1522
    %1524 = vdwg.mxu0
    %1525 = vmatpush.bf16.msra.mxu0 %v1472
    %1526 = vmatpush.bf16.msra.mxu0 %v1470
    %1527 = vmatpush.bf16.msra.mxu0 %v1468
    %1528 = vmatpush.bf16.msra.mxu0 %v1466
    %1529 = vmatpush.bf16.msra.mxu0 %v1464
    %1530 = vmatpush.bf16.msra.mxu0 %v1462
    %1531 = vmatpush.bf16.msra.mxu0 %v1460
    %1532 = vmatpush.bf16.msra.mxu0 %v1458
    %1533 = vmatmul.bf16.gmra.mxu0 %v1009
    %v1534 = vpop.f32.mrf.mxu0
    %v1535 = vadd.f32 %v1516, %v1534
    %v1536 = vpop.f32.mrf.mxu0
    %v1537 = vadd.f32 %v1518, %v1536
    %1538 = vmatmul.bf16.gmra.mxu0 %v1011
    %v1539 = vpop.f32.mrf.mxu0
    %v1540 = vadd.f32 %v1521, %v1539
    %v1541 = vpop.f32.mrf.mxu0
    %v1542 = vadd.f32 %v1523, %v1541
    %1543 = vdwg.mxu0
    %1544 = vmatpush.bf16.msra.mxu0 %v1457
    %1545 = vmatpush.bf16.msra.mxu0 %v1455
    %1546 = vmatpush.bf16.msra.mxu0 %v1453
    %1547 = vmatpush.bf16.msra.mxu0 %v1451
    %1548 = vmatpush.bf16.msra.mxu0 %v1449
    %1549 = vmatpush.bf16.msra.mxu0 %v1447
    %1550 = vmatpush.bf16.msra.mxu0 %v1445
    %1551 = vmatpush.bf16.msra.mxu0 %v1443
    %1552 = vmatmul.bf16.gmra.mxu0 %v1008
    %v1553 = vpop.f32.mrf.mxu0
    %v1554 = vadd.f32 0.0, %v1553
    %v1555 = vpop.f32.mrf.mxu0
    %v1556 = vadd.f32 0.0, %v1555
    %1557 = vmatmul.bf16.gmra.mxu0 %v1010
    %v1558 = vpop.f32.mrf.mxu0
    %v1559 = vadd.f32 0.0, %v1558
    %v1560 = vpop.f32.mrf.mxu0
    %v1561 = vadd.f32 0.0, %v1560
    %1562 = vdwg.mxu0
    %1563 = vmatpush.bf16.msra.mxu0 %v1473
    %1564 = vmatpush.bf16.msra.mxu0 %v1471
    %1565 = vmatpush.bf16.msra.mxu0 %v1469
    %1566 = vmatpush.bf16.msra.mxu0 %v1467
    %1567 = vmatpush.bf16.msra.mxu0 %v1465
    %1568 = vmatpush.bf16.msra.mxu0 %v1463
    %1569 = vmatpush.bf16.msra.mxu0 %v1461
    %1570 = vmatpush.bf16.msra.mxu0 %v1459
    %1571 = vmatmul.bf16.gmra.mxu0 %v1009
    %v1572 = vpop.f32.mrf.mxu0
    %v1573 = vadd.f32 %v1554, %v1572
    %v1574 = vpop.f32.mrf.mxu0
    %v1575 = vadd.f32 %v1556, %v1574
    %1576 = vmatmul.bf16.gmra.mxu0 %v1011
    %v1577 = vpop.f32.mrf.mxu0
    %v1578 = vadd.f32 %v1559, %v1577
    %v1579 = vpop.f32.mrf.mxu0
    %v1580 = vadd.f32 %v1561, %v1579
    %1581 = vdwg.mxu0
    %v1586 = vrot.slane %v1233, 7
    %v1587 = vrot.slane %v1271, 7
    %v1588 = vrot.slane %v1235, 7
    %v1589 = vsel %vm680, %v1586, %v1588
    %v1590 = vrot.slane %v1273, 7
    %v1591 = vsel %vm680, %v1587, %v1590
    %v1600 = vrot.slane %v1238, 7
    %v1601 = vrot.slane %v1276, 7
    %v1602 = vrot.slane %v1240, 7
    %v1603 = vsel %vm680, %v1600, %v1602
    %v1604 = vrot.slane %v1278, 7
    %v1605 = vsel %vm680, %v1601, %v1604
    %v1610 = vsel %vm680, 0.0, %v1586
    %v1611 = vsel %vm680, 0.0, %v1587
    %v1612 = vsel %vm680, 0.0, %v1600
    %v1613 = vsel %vm680, 0.0, %v1601
    %v1646 = vunpack.c.l.b16 %v1281
    %v1647 = vunpack.c.h.b16 %v1281
    %v1648 = vunpack.c.l.b16 %v1282
    %v1649 = vunpack.c.h.b16 %v1282
    %v1650 = vunpack.c.l.b16 %v1283
    %v1651 = vunpack.c.h.b16 %v1283
    %v1652 = vunpack.c.l.b16 %v1284
    %v1653 = vunpack.c.h.b16 %v1284
    %v1654 = vunpack.c.l.b16 %v1285
    %v1655 = vunpack.c.h.b16 %v1285
    %v1656 = vunpack.c.l.b16 %v1286
    %v1657 = vunpack.c.h.b16 %v1286
    %v1658 = vunpack.c.l.b16 %v1287
    %v1659 = vunpack.c.h.b16 %v1287
    %v1660 = vunpack.c.l.b16 %v1288
    %v1661 = vunpack.c.h.b16 %v1288
    %v1662 = vunpack.c.l.b16 %v1289
    %v1663 = vunpack.c.h.b16 %v1289
    %v1664 = vunpack.c.l.b16 %v1290
    %v1665 = vunpack.c.h.b16 %v1290
    %v1666 = vunpack.c.l.b16 %v1291
    %v1667 = vunpack.c.h.b16 %v1291
    %v1668 = vunpack.c.l.b16 %v1292
    %v1669 = vunpack.c.h.b16 %v1292
    %v1670 = vunpack.c.l.b16 %v1293
    %v1671 = vunpack.c.h.b16 %v1293
    %v1672 = vunpack.c.l.b16 %v1294
    %v1673 = vunpack.c.h.b16 %v1294
    %v1674 = vunpack.c.l.b16 %v1295
    %v1675 = vunpack.c.h.b16 %v1295
    %v1676 = vunpack.c.l.b16 %v1296
    %v1677 = vunpack.c.h.b16 %v1296
    %v1678 = vunpack.c.l.b16 %v1297
    %v1679 = vunpack.c.h.b16 %v1297
    %v1680 = vunpack.c.l.b16 %v1298
    %v1681 = vunpack.c.h.b16 %v1298
    %v1682 = vunpack.c.l.b16 %v1299
    %v1683 = vunpack.c.h.b16 %v1299
    %v1684 = vunpack.c.l.b16 %v1300
    %v1685 = vunpack.c.h.b16 %v1300
    %v1686 = vunpack.c.l.b16 %v1301
    %v1687 = vunpack.c.h.b16 %v1301
    %v1688 = vunpack.c.l.b16 %v1302
    %v1689 = vunpack.c.h.b16 %v1302
    %v1690 = vunpack.c.l.b16 %v1303
    %v1691 = vunpack.c.h.b16 %v1303
    %v1692 = vunpack.c.l.b16 %v1304
    %v1693 = vunpack.c.h.b16 %v1304
    %v1694 = vunpack.c.l.b16 %v1305
    %v1695 = vunpack.c.h.b16 %v1305
    %v1696 = vunpack.c.l.b16 %v1306
    %v1697 = vunpack.c.h.b16 %v1306
    %v1698 = vunpack.c.l.b16 %v1307
    %v1699 = vunpack.c.h.b16 %v1307
    %v1700 = vunpack.c.l.b16 %v1308
    %v1701 = vunpack.c.h.b16 %v1308
    %v1702 = vunpack.c.l.b16 %v1309
    %v1703 = vunpack.c.h.b16 %v1309
    %v1704 = vunpack.c.l.b16 %v1310
    %v1705 = vunpack.c.h.b16 %v1310
    %v1706 = vunpack.c.l.b16 %v1311
    %v1707 = vunpack.c.h.b16 %v1311
    %v1708 = vunpack.c.l.b16 %v1312
    %v1709 = vunpack.c.h.b16 %v1312
    %v1710 = vpack.c.b16 %v1648, %v1646
    %v1711 = vpack.c.b16 %v1649, %v1647
    %v1712 = vpack.c.b16 %v1652, %v1650
    %v1713 = vpack.c.b16 %v1653, %v1651
    %v1714 = vpack.c.b16 %v1656, %v1654
    %v1715 = vpack.c.b16 %v1657, %v1655
    %v1716 = vpack.c.b16 %v1660, %v1658
    %v1717 = vpack.c.b16 %v1661, %v1659
    %v1718 = vpack.c.b16 %v1664, %v1662
    %v1719 = vpack.c.b16 %v1665, %v1663
    %v1720 = vpack.c.b16 %v1668, %v1666
    %v1721 = vpack.c.b16 %v1669, %v1667
    %v1722 = vpack.c.b16 %v1672, %v1670
    %v1723 = vpack.c.b16 %v1673, %v1671
    %v1724 = vpack.c.b16 %v1676, %v1674
    %v1725 = vpack.c.b16 %v1677, %v1675
    %v1726 = vpack.c.b16 %v1680, %v1678
    %v1727 = vpack.c.b16 %v1681, %v1679
    %v1728 = vpack.c.b16 %v1684, %v1682
    %v1729 = vpack.c.b16 %v1685, %v1683
    %v1730 = vpack.c.b16 %v1688, %v1686
    %v1731 = vpack.c.b16 %v1689, %v1687
    %v1732 = vpack.c.b16 %v1692, %v1690
    %v1733 = vpack.c.b16 %v1693, %v1691
    %v1734 = vpack.c.b16 %v1696, %v1694
    %v1735 = vpack.c.b16 %v1697, %v1695
    %v1736 = vpack.c.b16 %v1700, %v1698
    %v1737 = vpack.c.b16 %v1701, %v1699
    %v1738 = vpack.c.b16 %v1704, %v1702
    %v1739 = vpack.c.b16 %v1705, %v1703
    %v1740 = vpack.c.b16 %v1708, %v1706
    %v1741 = vpack.c.b16 %v1709, %v1707
    %1774 = vmatpush.bf16.msra.mxu0 %v1724
    %1775 = vmatpush.bf16.msra.mxu0 %v1722
    %1776 = vmatpush.bf16.msra.mxu0 %v1720
    %1777 = vmatpush.bf16.msra.mxu0 %v1718
    %1778 = vmatpush.bf16.msra.mxu0 %v1716
    %1779 = vmatpush.bf16.msra.mxu0 %v1714
    %1780 = vmatpush.bf16.msra.mxu0 %v1712
    %1781 = vmatpush.bf16.msra.mxu0 %v1710
    %1782 = vmatmul.bf16.gmra.mxu0 %v1008
    %v1783 = vpop.f32.mrf.mxu0
    %v1784 = vadd.f32 %v1610, %v1783
    %v1785 = vpop.f32.mrf.mxu0
    %v1786 = vadd.f32 %v1589, %v1785
    %1787 = vmatmul.bf16.gmra.mxu0 %v1010
    %v1788 = vpop.f32.mrf.mxu0
    %v1789 = vadd.f32 %v1612, %v1788
    %v1790 = vpop.f32.mrf.mxu0
    %v1791 = vadd.f32 %v1603, %v1790
    %1792 = vdwg.mxu0
    %1793 = vmatpush.bf16.msra.mxu0 %v1740
    %1794 = vmatpush.bf16.msra.mxu0 %v1738
    %1795 = vmatpush.bf16.msra.mxu0 %v1736
    %1796 = vmatpush.bf16.msra.mxu0 %v1734
    %1797 = vmatpush.bf16.msra.mxu0 %v1732
    %1798 = vmatpush.bf16.msra.mxu0 %v1730
    %1799 = vmatpush.bf16.msra.mxu0 %v1728
    %1800 = vmatpush.bf16.msra.mxu0 %v1726
    %1801 = vmatmul.bf16.gmra.mxu0 %v1009
    %v1802 = vpop.f32.mrf.mxu0
    %v1803 = vadd.f32 %v1784, %v1802
    %v1804 = vpop.f32.mrf.mxu0
    %v1805 = vadd.f32 %v1786, %v1804
    %1806 = vmatmul.bf16.gmra.mxu0 %v1011
    %v1807 = vpop.f32.mrf.mxu0
    %v1808 = vadd.f32 %v1789, %v1807
    %v1809 = vpop.f32.mrf.mxu0
    %v1810 = vadd.f32 %v1791, %v1809
    %1811 = vdwg.mxu0
    %1812 = vmatpush.bf16.msra.mxu0 %v1725
    %1813 = vmatpush.bf16.msra.mxu0 %v1723
    %1814 = vmatpush.bf16.msra.mxu0 %v1721
    %1815 = vmatpush.bf16.msra.mxu0 %v1719
    %1816 = vmatpush.bf16.msra.mxu0 %v1717
    %1817 = vmatpush.bf16.msra.mxu0 %v1715
    %1818 = vmatpush.bf16.msra.mxu0 %v1713
    %1819 = vmatpush.bf16.msra.mxu0 %v1711
    %1820 = vmatmul.bf16.gmra.mxu0 %v1008
    %v1821 = vpop.f32.mrf.mxu0
    %v1822 = vadd.f32 %v1611, %v1821
    %v1823 = vpop.f32.mrf.mxu0
    %v1824 = vadd.f32 %v1591, %v1823
    %1825 = vmatmul.bf16.gmra.mxu0 %v1010
    %v1826 = vpop.f32.mrf.mxu0
    %v1827 = vadd.f32 %v1613, %v1826
    %v1828 = vpop.f32.mrf.mxu0
    %v1829 = vadd.f32 %v1605, %v1828
    %1830 = vdwg.mxu0
    %1831 = vmatpush.bf16.msra.mxu0 %v1741
    %1832 = vmatpush.bf16.msra.mxu0 %v1739
    %1833 = vmatpush.bf16.msra.mxu0 %v1737
    %1834 = vmatpush.bf16.msra.mxu0 %v1735
    %1835 = vmatpush.bf16.msra.mxu0 %v1733
    %1836 = vmatpush.bf16.msra.mxu0 %v1731
    %1837 = vmatpush.bf16.msra.mxu0 %v1729
    %1838 = vmatpush.bf16.msra.mxu0 %v1727
    %1839 = vmatmul.bf16.gmra.mxu0 %v1009
    %v1840 = vpop.f32.mrf.mxu0
    %v1841 = vadd.f32 %v1822, %v1840
    %v1842 = vpop.f32.mrf.mxu0
    %v1843 = vadd.f32 %v1824, %v1842
    %1844 = vmatmul.bf16.gmra.mxu0 %v1011
    %v1845 = vpop.f32.mrf.mxu0
    %v1846 = vadd.f32 %v1827, %v1845
    %v1847 = vpop.f32.mrf.mxu0
    %v1848 = vadd.f32 %v1829, %v1847
    %1849 = vdwg.mxu0
    %v1854 = vrot.slane %v1535, 1
    %v1855 = vrot.slane %v1537, 1
    %v1856 = vsel %vm949, %v1854, %v1855
    %v1857 = vrot.slane %v1573, 1
    %v1858 = vrot.slane %v1575, 1
    %v1859 = vsel %vm949, %v1857, %v1858
    %v1868 = vrot.slane %v1540, 1
    %v1869 = vrot.slane %v1542, 1
    %v1870 = vsel %vm949, %v1868, %v1869
    %v1871 = vrot.slane %v1578, 1
    %v1872 = vrot.slane %v1580, 1
    %v1873 = vsel %vm949, %v1871, %v1872
    %v1878 = vsel %vm949, %v1855, 0.0
    %v1879 = vsel %vm949, %v1858, 0.0
    %v1880 = vsel %vm949, %v1869, 0.0
    %v1881 = vsel %vm949, %v1872, 0.0
    %v1882 = vadd.f32 %v1803, %v1856
    %v1883 = vadd.f32 %v1841, %v1859
    %v1884 = vadd.f32 %v1805, %v1878
    %v1885 = vadd.f32 %v1843, %v1879
    %v1886 = vadd.f32 %v1808, %v1870
    %v1887 = vadd.f32 %v1846, %v1873
    %v1888 = vadd.f32 %v1810, %v1880
    %v1889 = vadd.f32 %v1848, %v1881
    %v1890 = vld [vmem:[%s4] sm:$0x3]
    %v1892 = vperm.slane %v1890, 0
    %v1893 = vperm.slane %v1890, 1
    %v1896 = vadd.f32 %v1882, %v1892
    %v1897 = vadd.f32 %v1883, %v1893
    %v1898 = vadd.f32 %v1884, %v1892
    %v1899 = vadd.f32 %v1885, %v1893
    %v1900 = vadd.f32 %v1886, %v1892
    %v1901 = vadd.f32 %v1887, %v1893
    %v1902 = vadd.f32 %v1888, %v1892
    %v1903 = vadd.f32 %v1889, %v1893
    %v1904 = vpack.c.bf16 %v1897, %v1896
    %v1905 = vpack.c.bf16 %v1899, %v1898
    %v1906 = vpack.c.bf16 %v1901, %v1900
    %v1907 = vpack.c.bf16 %v1903, %v1902
    %1908 = vst [vmem:[#allocation10] sm:$0xff] %v1904
    %1909 = vst [vmem:[#allocation10 + $0x8] sm:$0xff] %v1905
    %1910 = vst [vmem:[#allocation10 + $0x10] sm:$0xff] %v1906
    %1911 = vst [vmem:[#allocation10 + $0x18] sm:$0xff] %v1907
    // Predicated region
    $region38: #{tpu_custom_call.1} parent=1 // pred_check
      _
    $region39: #{tpu_custom_call.1} parent=1 // pred_check_branch
      %1913 = sbr.rel (0) target = $region41
    $region40: #{tpu_custom_call.1} parent=1 // pred_region
      %1915 = vsyncadd [#allocation4], 0
      %s1916 = sshll.u32 [#allocation10], 4
      %s1917 = int_to_ptr.vmem [resolvable:$true] %s1916
      %s1918 = sshll.u32 %s5, 4
      %s1919 = int_to_ptr.hbm [resolvable:$true] %s1918
      %1924 = dma.vmem_to_hbm [thread:$0]  %s1917, 512, %s1919, [#allocation4], 128, 128, 8
    $region41: #{tpu_custom_call.1} parent=1 // pred_fallthru
      _
    // Predicated region
    $region42: #{tpu_custom_call.1} parent=1 // pred_check
      _
    $region43: #{tpu_custom_call.1} parent=1 // pred_check_branch
      %1926 = sbr.rel (0) target = $region45
    $region44: #{tpu_custom_call.1} parent=1 // pred_region
      %1928 = dma.done [#allocation4], 512
    $region45: #{tpu_custom_call.1} parent=1 // pred_fallthru
      _
    %1929 = vsyncpa [#allocation3], 1
    %1930 = vsyncpa [#allocation6], 1
    %1931 = vsyncpa [#allocation9], 1
    %1932 = vsyncpa [#allocation4], 1

</llo_original>
